<compile_context>
chip_gen: v7x
topology: tpu7x:2x2x1
jax: 0.10.0
libtpu: 0.0.40
codegen_flags: <defaults>
</compile_context>

<pallas_src>
import functools

import jax
import jax.numpy as jnp
import numpy as np
from jax.experimental import pallas as pl
from jax.experimental.pallas import tpu as pltpu

KH = KW = 7
PAD = 3


def spatial_attn_kernel(w_ref, b_ref, x_ref, o_ref, pad_ref, *, H, W):
    # w_ref:   SMEM (2*KH*KW,)       flattened conv weight, OIHW (in0=avg, in1=max)
    # b_ref:   SMEM (1,)             conv bias
    # x_ref:   VMEM (Nb, C, H*W)     lane-dense input block
    # o_ref:   VMEM (Nb, C, H*W)     output block
    # pad_ref: VMEM (2, Nb, H+6, W+6) f32 scratch: zero-padded (avg, max) maps
    Nb = x_ref.shape[0]
    HW = H * W
    Hp = H + 2 * PAD
    Wp = W + 2 * PAD

    # ---- Channel statistics, f32 accumulation, lane-dense layout -----------
    x_all = x_ref[...]                                          # (Nb, C, HW)
    avg = jnp.mean(x_all, axis=1, dtype=jnp.float32)            # (Nb, HW)
    mx = jnp.max(x_all, axis=1).astype(jnp.float32)             # (Nb, HW)

    # ---- Zero only the 3-px halo (interior fully overwritten just below) ---
    zr = jnp.zeros((2, Nb, PAD, Wp), jnp.float32)
    pad_ref[:, :, :PAD, :] = zr
    pad_ref[:, :, PAD + H:, :] = zr
    zc = jnp.zeros((2, Nb, Hp, PAD), jnp.float32)
    pad_ref[:, :, :, :PAD] = zc
    pad_ref[:, :, :, PAD + W:] = zc

    # ---- One store per channel into the padded interior --------------------
    pad_ref[0, :, PAD:PAD + H, PAD:PAD + W] = avg.reshape(Nb, H, W)
    pad_ref[1, :, PAD:PAD + H, PAD:PAD + W] = mx.reshape(Nb, H, W)

    # ---- 7x7 conv over the 2-channel (avg, max) map -------------------------
    # Lane-direction (kw) shift hoisted out of the kh loop; one independent
    # accumulator per kw so the VPU can co-issue across chains.
    accs = []
    for kw in range(KW):
        col_a = pad_ref[0, :, :, kw:kw + W]                     # (Nb, Hp, W)
        col_m = pad_ref[1, :, :, kw:kw + W]                     # (Nb, Hp, W)
        a = jnp.zeros((Nb, H, W), jnp.float32)
        for kh in range(KH):
            w_a = w_ref[kh * KW + kw]                           # weight[0, 0, kh, kw]
            w_m = w_ref[KH * KW + kh * KW + kw]                 # weight[0, 1, kh, kw]
            a = a + w_a * col_a[:, kh:kh + H, :] + w_m * col_m[:, kh:kh + H, :]
        accs.append(a)
    acc = (((accs[0] + accs[1]) + (accs[2] + accs[3]))
           + ((accs[4] + accs[5]) + accs[6])) + b_ref[0]

    att = jax.nn.sigmoid(acc)                                   # (Nb, H, W) f32 (EUP)
    att_flat = att.reshape(Nb, 1, HW)                           # back to lane-dense

    # ---- Apply attention; re-read x so it is not live across the conv ------
    x_all = x_ref[...]                                          # (Nb, C, HW)
    o_ref[...] = (x_all * att_flat.astype(x_all.dtype)).astype(o_ref.dtype)


def _pick_images_per_block(n, per_image_bytes, target_bytes=1 << 20):
    """Largest divisor Nb of n with Nb*per_image <= target and grid >= 2 (if n >= 2)."""
    nb = 1
    for cand in range(1, n + 1):
        if n % cand:
            continue
        if cand * per_image_bytes > target_bytes:
            break
        if n >= 2 and n // cand < 2:
            break
        nb = cand
    return nb


def spatial_attention(x, weight, bias):
    """x: (N, C, H, W); weight: (1, 2, 7, 7); bias: (1,)."""
    N, C, H, W = x.shape
    HW = H * W
    Hp, Wp = H + 2 * PAD, W + 2 * PAD
    itemsize = jnp.dtype(x.dtype).itemsize

    nb = _pick_images_per_block(N, C * HW * itemsize)
    grid = (N // nb,)

    # Free layout change: merge the minor spatial dims so the kernel's big
    # passes (reduce, multiply, store) see a lane-dense last dimension.
    x_flat = x.reshape(N, C, HW)
    w_flat = weight.reshape(-1).astype(jnp.float32)             # (98,), OIHW order
    b = bias.astype(jnp.float32)                                # (1,)

    cost = pl.CostEstimate(
        flops=int(N * HW * (3 * C + 4 * KH * KW)),
        transcendentals=int(N * HW),
        bytes_accessed=int(2 * N * C * HW * itemsize),
    )

    out_flat = pl.pallas_call(
        functools.partial(spatial_attn_kernel, H=H, W=W),
        out_shape=jax.ShapeDtypeStruct((N, C, HW), x.dtype),
        grid_spec=pltpu.PrefetchScalarGridSpec(
            num_scalar_prefetch=0,
            grid=grid,
            in_specs=[
                pl.BlockSpec(memory_space=pltpu.MemorySpace.SMEM),   # conv weights
                pl.BlockSpec(memory_space=pltpu.MemorySpace.SMEM),   # conv bias
                pl.BlockSpec((nb, C, HW), lambda n: (n, 0, 0)),      # input block
            ],
            out_specs=pl.BlockSpec((nb, C, HW), lambda n: (n, 0, 0)),
            scratch_shapes=[
                pltpu.VMEM((2, nb, Hp, Wp), jnp.float32),  # padded (avg, max) maps
            ],
        ),
        compiler_params=pltpu.CompilerParams(
            dimension_semantics=("parallel",)),
        cost_estimate=cost,
    )(w_flat, b, x_flat)

    return out_flat.reshape(N, C, H, W)


def ref_spatial_attention(x, weight, bias):
    """Pure-JAX reference matching the PyTorch module."""
    avg = jnp.mean(x, axis=1, keepdims=True)
    mx = jnp.max(x, axis=1, keepdims=True)
    att_in = jnp.concatenate([avg, mx], axis=1)                 # (N, 2, H, W)
    conv = jax.lax.conv_general_dilated(
        att_in, weight, window_strides=(1, 1),
        padding=((PAD, PAD), (PAD, PAD)),
        dimension_numbers=("NCHW", "OIHW", "NCHW"))
    att = jax.nn.sigmoid(conv + bias.reshape(1, -1, 1, 1))
    return x * att


if __name__ == "__main__":
    key = jax.random.PRNGKey(0)
    kx, kw, kb = jax.random.split(key, 3)

    N, C, H, W = 2, 4, 16, 16
    x = jax.random.normal(kx, (N, C, H, W), dtype=jnp.float32)
    # Deterministic synthetic params (Conv2d(2, 1, 7, padding=3) shapes).
    weight = jax.random.normal(kw, (1, 2, KH, KW), dtype=jnp.float32) * 0.1
    bias = jax.random.normal(kb, (1,), dtype=jnp.float32) * 0.1

    out = jax.block_until_ready(spatial_attention(x, weight, bias))
    ref = jax.block_until_ready(ref_spatial_attention(x, weight, bias))

    np.testing.assert_allclose(np.asarray(out), np.asarray(ref),
                               rtol=1e-5, atol=1e-5)
    print("KERNEL_OK")
</pallas_src>

<mosaic_0001>
module attributes {stable_mosaic.version = 11 : i64} {
  func.func @spatial_attn_kernel(%arg0: i32, %arg1: memref<98xf32, #tpu.memory_space<smem>>, %arg2: memref<1xf32, #tpu.memory_space<smem>>, %arg3: memref<1x4x256xf32, #tpu.memory_space<vmem>>, %arg4: memref<1x4x256xf32, #tpu.memory_space<vmem>>, %arg5: memref<2x1x22x22xf32, #tpu.memory_space<vmem>>) attributes {dimension_semantics = [#tpu.dimension_semantics<parallel>], iteration_bounds = array<i64: 2>, scalar_prefetch = 0 : i64, scratch_operands = 1 : i64, tpu.core_type = #tpu.core_type<tc>, window_params = [{transform_indices = @transform_0, window_bounds = array<i64: 98>}, {transform_indices = @transform_1, window_bounds = array<i64: 1>}, {transform_indices = @transform_2, window_bounds = array<i64: 1, 4, 256>}, {transform_indices = @transform_3, window_bounds = array<i64: 1, 4, 256>}]} {
    %c0 = arith.constant 0 : index
    %c0_0 = arith.constant 0 : index
    %c0_1 = arith.constant 0 : index
    %0 = vector.load %arg3[%c0, %c0_0, %c0_1] : memref<1x4x256xf32, #tpu.memory_space<vmem>>, vector<1x4x256xf32>
    %cst = arith.constant dense<0.000000e+00> : vector<1x256xf32>
    %1 = vector.multi_reduction <add>, %0, %cst [1] : vector<1x4x256xf32> to vector<1x256xf32>
    %cst_2 = arith.constant 4.000000e+00 : f32
    %2 = vector.broadcast %cst_2 : f32 to vector<1x256xf32>
    %3 = arith.divf %1, %2 : vector<1x256xf32>
    %cst_3 = arith.constant dense<0xFF800000> : vector<1x256xf32>
    %4 = vector.multi_reduction <maximumf>, %0, %cst_3 [1] : vector<1x4x256xf32> to vector<1x256xf32>
    %cst_4 = arith.constant 0.000000e+00 : f32
    %5 = vector.broadcast %cst_4 : f32 to vector<2x1x3x22xf32>
    %c0_5 = arith.constant 0 : index
    %c0_6 = arith.constant 0 : index
    %c0_7 = arith.constant 0 : index
    %c0_8 = arith.constant 0 : index
    %6 = vector.load %arg5[%c0_5, %c0_6, %c0_7, %c0_8] : memref<2x1x22x22xf32, #tpu.memory_space<vmem>>, vector<2x1x3x22xf32>
    tpu.vector_store %arg5[%c0_5, %c0_6, %c0_7, %c0_8], %5 {strides = array<i32>} : memref<2x1x22x22xf32, #tpu.memory_space<vmem>>, vector<2x1x3x22xf32>,
    %c0_9 = arith.constant 0 : index
    %c0_10 = arith.constant 0 : index
    %c19 = arith.constant 19 : index
    %c0_11 = arith.constant 0 : index
    %7 = vector.load %arg5[%c0_9, %c0_10, %c19, %c0_11] : memref<2x1x22x22xf32, #tpu.memory_space<vmem>>, vector<2x1x3x22xf32>
    tpu.vector_store %arg5[%c0_9, %c0_10, %c19, %c0_11], %5 {strides = array<i32>} : memref<2x1x22x22xf32, #tpu.memory_space<vmem>>, vector<2x1x3x22xf32>,
    %cst_12 = arith.constant 0.000000e+00 : f32
    %8 = vector.broadcast %cst_12 : f32 to vector<2x1x22x3xf32>
    %c0_13 = arith.constant 0 : index
    %c0_14 = arith.constant 0 : index
    %c0_15 = arith.constant 0 : index
    %c0_16 = arith.constant 0 : index
    %9 = vector.load %arg5[%c0_13, %c0_14, %c0_15, %c0_16] : memref<2x1x22x22xf32, #tpu.memory_space<vmem>>, vector<2x1x22x3xf32>
    tpu.vector_store %arg5[%c0_13, %c0_14, %c0_15, %c0_16], %8 {strides = array<i32>} : memref<2x1x22x22xf32, #tpu.memory_space<vmem>>, vector<2x1x22x3xf32>,
    %c0_17 = arith.constant 0 : index
    %c0_18 = arith.constant 0 : index
    %c0_19 = arith.constant 0 : index
    %c19_20 = arith.constant 19 : index
    %10 = vector.load %arg5[%c0_17, %c0_18, %c0_19, %c19_20] : memref<2x1x22x22xf32, #tpu.memory_space<vmem>>, vector<2x1x22x3xf32>
    tpu.vector_store %arg5[%c0_17, %c0_18, %c0_19, %c19_20], %8 {strides = array<i32>} : memref<2x1x22x22xf32, #tpu.memory_space<vmem>>, vector<2x1x22x3xf32>,
    %11 = vector.shape_cast %3 : vector<1x256xf32> to vector<1x16x16xf32>
    %c0_21 = arith.constant 0 : index
    %c0_22 = arith.constant 0 : index
    %c3 = arith.constant 3 : index
    %c3_23 = arith.constant 3 : index
    %12 = vector.load %arg5[%c0_21, %c0_22, %c3, %c3_23] : memref<2x1x22x22xf32, #tpu.memory_space<vmem>>, vector<1x1x16x16xf32>
    %13 = vector.shape_cast %12 : vector<1x1x16x16xf32> to vector<1x16x16xf32>
    %14 = vector.shape_cast %11 : vector<1x16x16xf32> to vector<1x1x16x16xf32>
    tpu.vector_store %arg5[%c0_21, %c0_22, %c3, %c3_23], %14 {strides = array<i32>} : memref<2x1x22x22xf32, #tpu.memory_space<vmem>>, vector<1x1x16x16xf32>,
    %15 = vector.shape_cast %4 : vector<1x256xf32> to vector<1x16x16xf32>
    %c1 = arith.constant 1 : index
    %c0_24 = arith.constant 0 : index
    %c3_25 = arith.constant 3 : index
    %c3_26 = arith.constant 3 : index
    %16 = vector.load %arg5[%c1, %c0_24, %c3_25, %c3_26] : memref<2x1x22x22xf32, #tpu.memory_space<vmem>>, vector<1x1x16x16xf32>
    %17 = vector.shape_cast %16 : vector<1x1x16x16xf32> to vector<1x16x16xf32>
    %18 = vector.shape_cast %15 : vector<1x16x16xf32> to vector<1x1x16x16xf32>
    tpu.vector_store %arg5[%c1, %c0_24, %c3_25, %c3_26], %18 {strides = array<i32>} : memref<2x1x22x22xf32, #tpu.memory_space<vmem>>, vector<1x1x16x16xf32>,
    %c0_27 = arith.constant 0 : index
    %c0_28 = arith.constant 0 : index
    %c0_29 = arith.constant 0 : index
    %c0_30 = arith.constant 0 : index
    %19 = vector.load %arg5[%c0_27, %c0_28, %c0_29, %c0_30] : memref<2x1x22x22xf32, #tpu.memory_space<vmem>>, vector<1x1x22x16xf32>
    %20 = vector.shape_cast %19 : vector<1x1x22x16xf32> to vector<1x22x16xf32>
    %c1_31 = arith.constant 1 : index
    %c0_32 = arith.constant 0 : index
    %c0_33 = arith.constant 0 : index
    %c0_34 = arith.constant 0 : index
    %21 = vector.load %arg5[%c1_31, %c0_32, %c0_33, %c0_34] : memref<2x1x22x22xf32, #tpu.memory_space<vmem>>, vector<1x1x22x16xf32>
    %22 = vector.shape_cast %21 : vector<1x1x22x16xf32> to vector<1x22x16xf32>
    %cst_35 = arith.constant 0.000000e+00 : f32
    %23 = vector.broadcast %cst_35 : f32 to vector<1x16x16xf32>
    %c0_36 = arith.constant 0 : index
    %24 = memref.load %arg1[%c0_36] : memref<98xf32, #tpu.memory_space<smem>>
    %c49 = arith.constant 49 : index
    %25 = memref.load %arg1[%c49] : memref<98xf32, #tpu.memory_space<smem>>
    %26 = vector.extract_strided_slice %20 {offsets = [0, 0, 0], sizes = [1, 16, 16], strides = [1, 1, 1]} : vector<1x22x16xf32> to vector<1x16x16xf32>
    %27 = vector.broadcast %24 : f32 to vector<1x16x16xf32>
    %28 = arith.mulf %27, %26 : vector<1x16x16xf32>
    %29 = arith.addf %23, %28 : vector<1x16x16xf32>
    %30 = vector.extract_strided_slice %22 {offsets = [0, 0, 0], sizes = [1, 16, 16], strides = [1, 1, 1]} : vector<1x22x16xf32> to vector<1x16x16xf32>
    %31 = vector.broadcast %25 : f32 to vector<1x16x16xf32>
    %32 = arith.mulf %31, %30 : vector<1x16x16xf32>
    %33 = arith.addf %29, %32 : vector<1x16x16xf32>
    %c7 = arith.constant 7 : index
    %34 = memref.load %arg1[%c7] : memref<98xf32, #tpu.memory_space<smem>>
    %c56 = arith.constant 56 : index
    %35 = memref.load %arg1[%c56] : memref<98xf32, #tpu.memory_space<smem>>
    %36 = vector.extract_strided_slice %20 {offsets = [0, 1, 0], sizes = [1, 16, 16], strides = [1, 1, 1]} : vector<1x22x16xf32> to vector<1x16x16xf32>
    %37 = vector.broadcast %34 : f32 to vector<1x16x16xf32>
    %38 = arith.mulf %37, %36 : vector<1x16x16xf32>
    %39 = arith.addf %33, %38 : vector<1x16x16xf32>
    %40 = vector.extract_strided_slice %22 {offsets = [0, 1, 0], sizes = [1, 16, 16], strides = [1, 1, 1]} : vector<1x22x16xf32> to vector<1x16x16xf32>
    %41 = vector.broadcast %35 : f32 to vector<1x16x16xf32>
    %42 = arith.mulf %41, %40 : vector<1x16x16xf32>
    %43 = arith.addf %39, %42 : vector<1x16x16xf32>
    %c14 = arith.constant 14 : index
    %44 = memref.load %arg1[%c14] : memref<98xf32, #tpu.memory_space<smem>>
    %c63 = arith.constant 63 : index
    %45 = memref.load %arg1[%c63] : memref<98xf32, #tpu.memory_space<smem>>
    %46 = vector.extract_strided_slice %20 {offsets = [0, 2, 0], sizes = [1, 16, 16], strides = [1, 1, 1]} : vector<1x22x16xf32> to vector<1x16x16xf32>
    %47 = vector.broadcast %44 : f32 to vector<1x16x16xf32>
    %48 = arith.mulf %47, %46 : vector<1x16x16xf32>
    %49 = arith.addf %43, %48 : vector<1x16x16xf32>
    %50 = vector.extract_strided_slice %22 {offsets = [0, 2, 0], sizes = [1, 16, 16], strides = [1, 1, 1]} : vector<1x22x16xf32> to vector<1x16x16xf32>
    %51 = vector.broadcast %45 : f32 to vector<1x16x16xf32>
    %52 = arith.mulf %51, %50 : vector<1x16x16xf32>
    %53 = arith.addf %49, %52 : vector<1x16x16xf32>
    %c21 = arith.constant 21 : index
    %54 = memref.load %arg1[%c21] : memref<98xf32, #tpu.memory_space<smem>>
    %c70 = arith.constant 70 : index
    %55 = memref.load %arg1[%c70] : memref<98xf32, #tpu.memory_space<smem>>
    %56 = vector.extract_strided_slice %20 {offsets = [0, 3, 0], sizes = [1, 16, 16], strides = [1, 1, 1]} : vector<1x22x16xf32> to vector<1x16x16xf32>
    %57 = vector.broadcast %54 : f32 to vector<1x16x16xf32>
    %58 = arith.mulf %57, %56 : vector<1x16x16xf32>
    %59 = arith.addf %53, %58 : vector<1x16x16xf32>
    %60 = vector.extract_strided_slice %22 {offsets = [0, 3, 0], sizes = [1, 16, 16], strides = [1, 1, 1]} : vector<1x22x16xf32> to vector<1x16x16xf32>
    %61 = vector.broadcast %55 : f32 to vector<1x16x16xf32>
    %62 = arith.mulf %61, %60 : vector<1x16x16xf32>
    %63 = arith.addf %59, %62 : vector<1x16x16xf32>
    %c28 = arith.constant 28 : index
    %64 = memref.load %arg1[%c28] : memref<98xf32, #tpu.memory_space<smem>>
    %c77 = arith.constant 77 : index
    %65 = memref.load %arg1[%c77] : memref<98xf32, #tpu.memory_space<smem>>
    %66 = vector.extract_strided_slice %20 {offsets = [0, 4, 0], sizes = [1, 16, 16], strides = [1, 1, 1]} : vector<1x22x16xf32> to vector<1x16x16xf32>
    %67 = vector.broadcast %64 : f32 to vector<1x16x16xf32>
    %68 = arith.mulf %67, %66 : vector<1x16x16xf32>
    %69 = arith.addf %63, %68 : vector<1x16x16xf32>
    %70 = vector.extract_strided_slice %22 {offsets = [0, 4, 0], sizes = [1, 16, 16], strides = [1, 1, 1]} : vector<1x22x16xf32> to vector<1x16x16xf32>
    %71 = vector.broadcast %65 : f32 to vector<1x16x16xf32>
    %72 = arith.mulf %71, %70 : vector<1x16x16xf32>
    %73 = arith.addf %69, %72 : vector<1x16x16xf32>
    %c35 = arith.constant 35 : index
    %74 = memref.load %arg1[%c35] : memref<98xf32, #tpu.memory_space<smem>>
    %c84 = arith.constant 84 : index
    %75 = memref.load %arg1[%c84] : memref<98xf32, #tpu.memory_space<smem>>
    %76 = vector.extract_strided_slice %20 {offsets = [0, 5, 0], sizes = [1, 16, 16], strides = [1, 1, 1]} : vector<1x22x16xf32> to vector<1x16x16xf32>
    %77 = vector.broadcast %74 : f32 to vector<1x16x16xf32>
    %78 = arith.mulf %77, %76 : vector<1x16x16xf32>
    %79 = arith.addf %73, %78 : vector<1x16x16xf32>
    %80 = vector.extract_strided_slice %22 {offsets = [0, 5, 0], sizes = [1, 16, 16], strides = [1, 1, 1]} : vector<1x22x16xf32> to vector<1x16x16xf32>
    %81 = vector.broadcast %75 : f32 to vector<1x16x16xf32>
    %82 = arith.mulf %81, %80 : vector<1x16x16xf32>
    %83 = arith.addf %79, %82 : vector<1x16x16xf32>
    %c42 = arith.constant 42 : index
    %84 = memref.load %arg1[%c42] : memref<98xf32, #tpu.memory_space<smem>>
    %c91 = arith.constant 91 : index
    %85 = memref.load %arg1[%c91] : memref<98xf32, #tpu.memory_space<smem>>
    %86 = vector.extract_strided_slice %20 {offsets = [0, 6, 0], sizes = [1, 16, 16], strides = [1, 1, 1]} : vector<1x22x16xf32> to vector<1x16x16xf32>
    %87 = vector.broadcast %84 : f32 to vector<1x16x16xf32>
    %88 = arith.mulf %87, %86 : vector<1x16x16xf32>
    %89 = arith.addf %83, %88 : vector<1x16x16xf32>
    %90 = vector.extract_strided_slice %22 {offsets = [0, 6, 0], sizes = [1, 16, 16], strides = [1, 1, 1]} : vector<1x22x16xf32> to vector<1x16x16xf32>
    %91 = vector.broadcast %85 : f32 to vector<1x16x16xf32>
    %92 = arith.mulf %91, %90 : vector<1x16x16xf32>
    %93 = arith.addf %89, %92 : vector<1x16x16xf32>
    %c0_37 = arith.constant 0 : index
    %c0_38 = arith.constant 0 : index
    %c0_39 = arith.constant 0 : index
    %c1_40 = arith.constant 1 : index
    %94 = vector.load %arg5[%c0_37, %c0_38, %c0_39, %c1_40] : memref<2x1x22x22xf32, #tpu.memory_space<vmem>>, vector<1x1x22x16xf32>
    %95 = vector.shape_cast %94 : vector<1x1x22x16xf32> to vector<1x22x16xf32>
    %c1_41 = arith.constant 1 : index
    %c0_42 = arith.constant 0 : index
    %c0_43 = arith.constant 0 : index
    %c1_44 = arith.constant 1 : index
    %96 = vector.load %arg5[%c1_41, %c0_42, %c0_43, %c1_44] : memref<2x1x22x22xf32, #tpu.memory_space<vmem>>, vector<1x1x22x16xf32>
    %97 = vector.shape_cast %96 : vector<1x1x22x16xf32> to vector<1x22x16xf32>
    %cst_45 = arith.constant 0.000000e+00 : f32
    %98 = vector.broadcast %cst_45 : f32 to vector<1x16x16xf32>
    %c1_46 = arith.constant 1 : index
    %99 = memref.load %arg1[%c1_46] : memref<98xf32, #tpu.memory_space<smem>>
    %c50 = arith.constant 50 : index
    %100 = memref.load %arg1[%c50] : memref<98xf32, #tpu.memory_space<smem>>
    %101 = vector.extract_strided_slice %95 {offsets = [0, 0, 0], sizes = [1, 16, 16], strides = [1, 1, 1]} : vector<1x22x16xf32> to vector<1x16x16xf32>
    %102 = vector.broadcast %99 : f32 to vector<1x16x16xf32>
    %103 = arith.mulf %102, %101 : vector<1x16x16xf32>
    %104 = arith.addf %98, %103 : vector<1x16x16xf32>
    %105 = vector.extract_strided_slice %97 {offsets = [0, 0, 0], sizes = [1, 16, 16], strides = [1, 1, 1]} : vector<1x22x16xf32> to vector<1x16x16xf32>
    %106 = vector.broadcast %100 : f32 to vector<1x16x16xf32>
    %107 = arith.mulf %106, %105 : vector<1x16x16xf32>
    %108 = arith.addf %104, %107 : vector<1x16x16xf32>
    %c8 = arith.constant 8 : index
    %109 = memref.load %arg1[%c8] : memref<98xf32, #tpu.memory_space<smem>>
    %c57 = arith.constant 57 : index
    %110 = memref.load %arg1[%c57] : memref<98xf32, #tpu.memory_space<smem>>
    %111 = vector.extract_strided_slice %95 {offsets = [0, 1, 0], sizes = [1, 16, 16], strides = [1, 1, 1]} : vector<1x22x16xf32> to vector<1x16x16xf32>
    %112 = vector.broadcast %109 : f32 to vector<1x16x16xf32>
    %113 = arith.mulf %112, %111 : vector<1x16x16xf32>
    %114 = arith.addf %108, %113 : vector<1x16x16xf32>
    %115 = vector.extract_strided_slice %97 {offsets = [0, 1, 0], sizes = [1, 16, 16], strides = [1, 1, 1]} : vector<1x22x16xf32> to vector<1x16x16xf32>
    %116 = vector.broadcast %110 : f32 to vector<1x16x16xf32>
    %117 = arith.mulf %116, %115 : vector<1x16x16xf32>
    %118 = arith.addf %114, %117 : vector<1x16x16xf32>
    %c15 = arith.constant 15 : index
    %119 = memref.load %arg1[%c15] : memref<98xf32, #tpu.memory_space<smem>>
    %c64 = arith.constant 64 : index
    %120 = memref.load %arg1[%c64] : memref<98xf32, #tpu.memory_space<smem>>
    %121 = vector.extract_strided_slice %95 {offsets = [0, 2, 0], sizes = [1, 16, 16], strides = [1, 1, 1]} : vector<1x22x16xf32> to vector<1x16x16xf32>
    %122 = vector.broadcast %119 : f32 to vector<1x16x16xf32>
    %123 = arith.mulf %122, %121 : vector<1x16x16xf32>
    %124 = arith.addf %118, %123 : vector<1x16x16xf32>
    %125 = vector.extract_strided_slice %97 {offsets = [0, 2, 0], sizes = [1, 16, 16], strides = [1, 1, 1]} : vector<1x22x16xf32> to vector<1x16x16xf32>
    %126 = vector.broadcast %120 : f32 to vector<1x16x16xf32>
    %127 = arith.mulf %126, %125 : vector<1x16x16xf32>
    %128 = arith.addf %124, %127 : vector<1x16x16xf32>
    %c22 = arith.constant 22 : index
    %129 = memref.load %arg1[%c22] : memref<98xf32, #tpu.memory_space<smem>>
    %c71 = arith.constant 71 : index
    %130 = memref.load %arg1[%c71] : memref<98xf32, #tpu.memory_space<smem>>
    %131 = vector.extract_strided_slice %95 {offsets = [0, 3, 0], sizes = [1, 16, 16], strides = [1, 1, 1]} : vector<1x22x16xf32> to vector<1x16x16xf32>
    %132 = vector.broadcast %129 : f32 to vector<1x16x16xf32>
    %133 = arith.mulf %132, %131 : vector<1x16x16xf32>
    %134 = arith.addf %128, %133 : vector<1x16x16xf32>
    %135 = vector.extract_strided_slice %97 {offsets = [0, 3, 0], sizes = [1, 16, 16], strides = [1, 1, 1]} : vector<1x22x16xf32> to vector<1x16x16xf32>
    %136 = vector.broadcast %130 : f32 to vector<1x16x16xf32>
    %137 = arith.mulf %136, %135 : vector<1x16x16xf32>
    %138 = arith.addf %134, %137 : vector<1x16x16xf32>
    %c29 = arith.constant 29 : index
    %139 = memref.load %arg1[%c29] : memref<98xf32, #tpu.memory_space<smem>>
    %c78 = arith.constant 78 : index
    %140 = memref.load %arg1[%c78] : memref<98xf32, #tpu.memory_space<smem>>
    %141 = vector.extract_strided_slice %95 {offsets = [0, 4, 0], sizes = [1, 16, 16], strides = [1, 1, 1]} : vector<1x22x16xf32> to vector<1x16x16xf32>
    %142 = vector.broadcast %139 : f32 to vector<1x16x16xf32>
    %143 = arith.mulf %142, %141 : vector<1x16x16xf32>
    %144 = arith.addf %138, %143 : vector<1x16x16xf32>
    %145 = vector.extract_strided_slice %97 {offsets = [0, 4, 0], sizes = [1, 16, 16], strides = [1, 1, 1]} : vector<1x22x16xf32> to vector<1x16x16xf32>
    %146 = vector.broadcast %140 : f32 to vector<1x16x16xf32>
    %147 = arith.mulf %146, %145 : vector<1x16x16xf32>
    %148 = arith.addf %144, %147 : vector<1x16x16xf32>
    %c36 = arith.constant 36 : index
    %149 = memref.load %arg1[%c36] : memref<98xf32, #tpu.memory_space<smem>>
    %c85 = arith.constant 85 : index
    %150 = memref.load %arg1[%c85] : memref<98xf32, #tpu.memory_space<smem>>
    %151 = vector.extract_strided_slice %95 {offsets = [0, 5, 0], sizes = [1, 16, 16], strides = [1, 1, 1]} : vector<1x22x16xf32> to vector<1x16x16xf32>
    %152 = vector.broadcast %149 : f32 to vector<1x16x16xf32>
    %153 = arith.mulf %152, %151 : vector<1x16x16xf32>
    %154 = arith.addf %148, %153 : vector<1x16x16xf32>
    %155 = vector.extract_strided_slice %97 {offsets = [0, 5, 0], sizes = [1, 16, 16], strides = [1, 1, 1]} : vector<1x22x16xf32> to vector<1x16x16xf32>
    %156 = vector.broadcast %150 : f32 to vector<1x16x16xf32>
    %157 = arith.mulf %156, %155 : vector<1x16x16xf32>
    %158 = arith.addf %154, %157 : vector<1x16x16xf32>
    %c43 = arith.constant 43 : index
    %159 = memref.load %arg1[%c43] : memref<98xf32, #tpu.memory_space<smem>>
    %c92 = arith.constant 92 : index
    %160 = memref.load %arg1[%c92] : memref<98xf32, #tpu.memory_space<smem>>
    %161 = vector.extract_strided_slice %95 {offsets = [0, 6, 0], sizes = [1, 16, 16], strides = [1, 1, 1]} : vector<1x22x16xf32> to vector<1x16x16xf32>
    %162 = vector.broadcast %159 : f32 to vector<1x16x16xf32>
    %163 = arith.mulf %162, %161 : vector<1x16x16xf32>
    %164 = arith.addf %158, %163 : vector<1x16x16xf32>
    %165 = vector.extract_strided_slice %97 {offsets = [0, 6, 0], sizes = [1, 16, 16], strides = [1, 1, 1]} : vector<1x22x16xf32> to vector<1x16x16xf32>
    %166 = vector.broadcast %160 : f32 to vector<1x16x16xf32>
    %167 = arith.mulf %166, %165 : vector<1x16x16xf32>
    %168 = arith.addf %164, %167 : vector<1x16x16xf32>
    %c0_47 = arith.constant 0 : index
    %c0_48 = arith.constant 0 : index
    %c0_49 = arith.constant 0 : index
    %c2 = arith.constant 2 : index
    %169 = vector.load %arg5[%c0_47, %c0_48, %c0_49, %c2] : memref<2x1x22x22xf32, #tpu.memory_space<vmem>>, vector<1x1x22x16xf32>
    %170 = vector.shape_cast %169 : vector<1x1x22x16xf32> to vector<1x22x16xf32>
    %c1_50 = arith.constant 1 : index
    %c0_51 = arith.constant 0 : index
    %c0_52 = arith.constant 0 : index
    %c2_53 = arith.constant 2 : index
    %171 = vector.load %arg5[%c1_50, %c0_51, %c0_52, %c2_53] : memref<2x1x22x22xf32, #tpu.memory_space<vmem>>, vector<1x1x22x16xf32>
    %172 = vector.shape_cast %171 : vector<1x1x22x16xf32> to vector<1x22x16xf32>
    %cst_54 = arith.constant 0.000000e+00 : f32
    %173 = vector.broadcast %cst_54 : f32 to vector<1x16x16xf32>
    %c2_55 = arith.constant 2 : index
    %174 = memref.load %arg1[%c2_55] : memref<98xf32, #tpu.memory_space<smem>>
    %c51 = arith.constant 51 : index
    %175 = memref.load %arg1[%c51] : memref<98xf32, #tpu.memory_space<smem>>
    %176 = vector.extract_strided_slice %170 {offsets = [0, 0, 0], sizes = [1, 16, 16], strides = [1, 1, 1]} : vector<1x22x16xf32> to vector<1x16x16xf32>
    %177 = vector.broadcast %174 : f32 to vector<1x16x16xf32>
    %178 = arith.mulf %177, %176 : vector<1x16x16xf32>
    %179 = arith.addf %173, %178 : vector<1x16x16xf32>
    %180 = vector.extract_strided_slice %172 {offsets = [0, 0, 0], sizes = [1, 16, 16], strides = [1, 1, 1]} : vector<1x22x16xf32> to vector<1x16x16xf32>
    %181 = vector.broadcast %175 : f32 to vector<1x16x16xf32>
    %182 = arith.mulf %181, %180 : vector<1x16x16xf32>
    %183 = arith.addf %179, %182 : vector<1x16x16xf32>
    %c9 = arith.constant 9 : index
    %184 = memref.load %arg1[%c9] : memref<98xf32, #tpu.memory_space<smem>>
    %c58 = arith.constant 58 : index
    %185 = memref.load %arg1[%c58] : memref<98xf32, #tpu.memory_space<smem>>
    %186 = vector.extract_strided_slice %170 {offsets = [0, 1, 0], sizes = [1, 16, 16], strides = [1, 1, 1]} : vector<1x22x16xf32> to vector<1x16x16xf32>
    %187 = vector.broadcast %184 : f32 to vector<1x16x16xf32>
    %188 = arith.mulf %187, %186 : vector<1x16x16xf32>
    %189 = arith.addf %183, %188 : vector<1x16x16xf32>
    %190 = vector.extract_strided_slice %172 {offsets = [0, 1, 0], sizes = [1, 16, 16], strides = [1, 1, 1]} : vector<1x22x16xf32> to vector<1x16x16xf32>
    %191 = vector.broadcast %185 : f32 to vector<1x16x16xf32>
    %192 = arith.mulf %191, %190 : vector<1x16x16xf32>
    %193 = arith.addf %189, %192 : vector<1x16x16xf32>
    %c16 = arith.constant 16 : index
    %194 = memref.load %arg1[%c16] : memref<98xf32, #tpu.memory_space<smem>>
    %c65 = arith.constant 65 : index
    %195 = memref.load %arg1[%c65] : memref<98xf32, #tpu.memory_space<smem>>
    %196 = vector.extract_strided_slice %170 {offsets = [0, 2, 0], sizes = [1, 16, 16], strides = [1, 1, 1]} : vector<1x22x16xf32> to vector<1x16x16xf32>
    %197 = vector.broadcast %194 : f32 to vector<1x16x16xf32>
    %198 = arith.mulf %197, %196 : vector<1x16x16xf32>
    %199 = arith.addf %193, %198 : vector<1x16x16xf32>
    %200 = vector.extract_strided_slice %172 {offsets = [0, 2, 0], sizes = [1, 16, 16], strides = [1, 1, 1]} : vector<1x22x16xf32> to vector<1x16x16xf32>
    %201 = vector.broadcast %195 : f32 to vector<1x16x16xf32>
    %202 = arith.mulf %201, %200 : vector<1x16x16xf32>
    %203 = arith.addf %199, %202 : vector<1x16x16xf32>
    %c23 = arith.constant 23 : index
    %204 = memref.load %arg1[%c23] : memref<98xf32, #tpu.memory_space<smem>>
    %c72 = arith.constant 72 : index
    %205 = memref.load %arg1[%c72] : memref<98xf32, #tpu.memory_space<smem>>
    %206 = vector.extract_strided_slice %170 {offsets = [0, 3, 0], sizes = [1, 16, 16], strides = [1, 1, 1]} : vector<1x22x16xf32> to vector<1x16x16xf32>
    %207 = vector.broadcast %204 : f32 to vector<1x16x16xf32>
    %208 = arith.mulf %207, %206 : vector<1x16x16xf32>
    %209 = arith.addf %203, %208 : vector<1x16x16xf32>
    %210 = vector.extract_strided_slice %172 {offsets = [0, 3, 0], sizes = [1, 16, 16], strides = [1, 1, 1]} : vector<1x22x16xf32> to vector<1x16x16xf32>
    %211 = vector.broadcast %205 : f32 to vector<1x16x16xf32>
    %212 = arith.mulf %211, %210 : vector<1x16x16xf32>
    %213 = arith.addf %209, %212 : vector<1x16x16xf32>
    %c30 = arith.constant 30 : index
    %214 = memref.load %arg1[%c30] : memref<98xf32, #tpu.memory_space<smem>>
    %c79 = arith.constant 79 : index
    %215 = memref.load %arg1[%c79] : memref<98xf32, #tpu.memory_space<smem>>
    %216 = vector.extract_strided_slice %170 {offsets = [0, 4, 0], sizes = [1, 16, 16], strides = [1, 1, 1]} : vector<1x22x16xf32> to vector<1x16x16xf32>
    %217 = vector.broadcast %214 : f32 to vector<1x16x16xf32>
    %218 = arith.mulf %217, %216 : vector<1x16x16xf32>
    %219 = arith.addf %213, %218 : vector<1x16x16xf32>
    %220 = vector.extract_strided_slice %172 {offsets = [0, 4, 0], sizes = [1, 16, 16], strides = [1, 1, 1]} : vector<1x22x16xf32> to vector<1x16x16xf32>
    %221 = vector.broadcast %215 : f32 to vector<1x16x16xf32>
    %222 = arith.mulf %221, %220 : vector<1x16x16xf32>
    %223 = arith.addf %219, %222 : vector<1x16x16xf32>
    %c37 = arith.constant 37 : index
    %224 = memref.load %arg1[%c37] : memref<98xf32, #tpu.memory_space<smem>>
    %c86 = arith.constant 86 : index
    %225 = memref.load %arg1[%c86] : memref<98xf32, #tpu.memory_space<smem>>
    %226 = vector.extract_strided_slice %170 {offsets = [0, 5, 0], sizes = [1, 16, 16], strides = [1, 1, 1]} : vector<1x22x16xf32> to vector<1x16x16xf32>
    %227 = vector.broadcast %224 : f32 to vector<1x16x16xf32>
    %228 = arith.mulf %227, %226 : vector<1x16x16xf32>
    %229 = arith.addf %223, %228 : vector<1x16x16xf32>
    %230 = vector.extract_strided_slice %172 {offsets = [0, 5, 0], sizes = [1, 16, 16], strides = [1, 1, 1]} : vector<1x22x16xf32> to vector<1x16x16xf32>
    %231 = vector.broadcast %225 : f32 to vector<1x16x16xf32>
    %232 = arith.mulf %231, %230 : vector<1x16x16xf32>
    %233 = arith.addf %229, %232 : vector<1x16x16xf32>
    %c44 = arith.constant 44 : index
    %234 = memref.load %arg1[%c44] : memref<98xf32, #tpu.memory_space<smem>>
    %c93 = arith.constant 93 : index
    %235 = memref.load %arg1[%c93] : memref<98xf32, #tpu.memory_space<smem>>
    %236 = vector.extract_strided_slice %170 {offsets = [0, 6, 0], sizes = [1, 16, 16], strides = [1, 1, 1]} : vector<1x22x16xf32> to vector<1x16x16xf32>
    %237 = vector.broadcast %234 : f32 to vector<1x16x16xf32>
    %238 = arith.mulf %237, %236 : vector<1x16x16xf32>
    %239 = arith.addf %233, %238 : vector<1x16x16xf32>
    %240 = vector.extract_strided_slice %172 {offsets = [0, 6, 0], sizes = [1, 16, 16], strides = [1, 1, 1]} : vector<1x22x16xf32> to vector<1x16x16xf32>
    %241 = vector.broadcast %235 : f32 to vector<1x16x16xf32>
    %242 = arith.mulf %241, %240 : vector<1x16x16xf32>
    %243 = arith.addf %239, %242 : vector<1x16x16xf32>
    %c0_56 = arith.constant 0 : index
    %c0_57 = arith.constant 0 : index
    %c0_58 = arith.constant 0 : index
    %c3_59 = arith.constant 3 : index
    %244 = vector.load %arg5[%c0_56, %c0_57, %c0_58, %c3_59] : memref<2x1x22x22xf32, #tpu.memory_space<vmem>>, vector<1x1x22x16xf32>
    %245 = vector.shape_cast %244 : vector<1x1x22x16xf32> to vector<1x22x16xf32>
    %c1_60 = arith.constant 1 : index
    %c0_61 = arith.constant 0 : index
    %c0_62 = arith.constant 0 : index
    %c3_63 = arith.constant 3 : index
    %246 = vector.load %arg5[%c1_60, %c0_61, %c0_62, %c3_63] : memref<2x1x22x22xf32, #tpu.memory_space<vmem>>, vector<1x1x22x16xf32>
    %247 = vector.shape_cast %246 : vector<1x1x22x16xf32> to vector<1x22x16xf32>
    %cst_64 = arith.constant 0.000000e+00 : f32
    %248 = vector.broadcast %cst_64 : f32 to vector<1x16x16xf32>
    %c3_65 = arith.constant 3 : index
    %249 = memref.load %arg1[%c3_65] : memref<98xf32, #tpu.memory_space<smem>>
    %c52 = arith.constant 52 : index
    %250 = memref.load %arg1[%c52] : memref<98xf32, #tpu.memory_space<smem>>
    %251 = vector.extract_strided_slice %245 {offsets = [0, 0, 0], sizes = [1, 16, 16], strides = [1, 1, 1]} : vector<1x22x16xf32> to vector<1x16x16xf32>
    %252 = vector.broadcast %249 : f32 to vector<1x16x16xf32>
    %253 = arith.mulf %252, %251 : vector<1x16x16xf32>
    %254 = arith.addf %248, %253 : vector<1x16x16xf32>
    %255 = vector.extract_strided_slice %247 {offsets = [0, 0, 0], sizes = [1, 16, 16], strides = [1, 1, 1]} : vector<1x22x16xf32> to vector<1x16x16xf32>
    %256 = vector.broadcast %250 : f32 to vector<1x16x16xf32>
    %257 = arith.mulf %256, %255 : vector<1x16x16xf32>
    %258 = arith.addf %254, %257 : vector<1x16x16xf32>
    %c10 = arith.constant 10 : index
    %259 = memref.load %arg1[%c10] : memref<98xf32, #tpu.memory_space<smem>>
    %c59 = arith.constant 59 : index
    %260 = memref.load %arg1[%c59] : memref<98xf32, #tpu.memory_space<smem>>
    %261 = vector.extract_strided_slice %245 {offsets = [0, 1, 0], sizes = [1, 16, 16], strides = [1, 1, 1]} : vector<1x22x16xf32> to vector<1x16x16xf32>
    %262 = vector.broadcast %259 : f32 to vector<1x16x16xf32>
    %263 = arith.mulf %262, %261 : vector<1x16x16xf32>
    %264 = arith.addf %258, %263 : vector<1x16x16xf32>
    %265 = vector.extract_strided_slice %247 {offsets = [0, 1, 0], sizes = [1, 16, 16], strides = [1, 1, 1]} : vector<1x22x16xf32> to vector<1x16x16xf32>
    %266 = vector.broadcast %260 : f32 to vector<1x16x16xf32>
    %267 = arith.mulf %266, %265 : vector<1x16x16xf32>
    %268 = arith.addf %264, %267 : vector<1x16x16xf32>
    %c17 = arith.constant 17 : index
    %269 = memref.load %arg1[%c17] : memref<98xf32, #tpu.memory_space<smem>>
    %c66 = arith.constant 66 : index
    %270 = memref.load %arg1[%c66] : memref<98xf32, #tpu.memory_space<smem>>
    %271 = vector.extract_strided_slice %245 {offsets = [0, 2, 0], sizes = [1, 16, 16], strides = [1, 1, 1]} : vector<1x22x16xf32> to vector<1x16x16xf32>
    %272 = vector.broadcast %269 : f32 to vector<1x16x16xf32>
    %273 = arith.mulf %272, %271 : vector<1x16x16xf32>
    %274 = arith.addf %268, %273 : vector<1x16x16xf32>
    %275 = vector.extract_strided_slice %247 {offsets = [0, 2, 0], sizes = [1, 16, 16], strides = [1, 1, 1]} : vector<1x22x16xf32> to vector<1x16x16xf32>
    %276 = vector.broadcast %270 : f32 to vector<1x16x16xf32>
    %277 = arith.mulf %276, %275 : vector<1x16x16xf32>
    %278 = arith.addf %274, %277 : vector<1x16x16xf32>
    %c24 = arith.constant 24 : index
    %279 = memref.load %arg1[%c24] : memref<98xf32, #tpu.memory_space<smem>>
    %c73 = arith.constant 73 : index
    %280 = memref.load %arg1[%c73] : memref<98xf32, #tpu.memory_space<smem>>
    %281 = vector.extract_strided_slice %245 {offsets = [0, 3, 0], sizes = [1, 16, 16], strides = [1, 1, 1]} : vector<1x22x16xf32> to vector<1x16x16xf32>
    %282 = vector.broadcast %279 : f32 to vector<1x16x16xf32>
    %283 = arith.mulf %282, %281 : vector<1x16x16xf32>
    %284 = arith.addf %278, %283 : vector<1x16x16xf32>
    %285 = vector.extract_strided_slice %247 {offsets = [0, 3, 0], sizes = [1, 16, 16], strides = [1, 1, 1]} : vector<1x22x16xf32> to vector<1x16x16xf32>
    %286 = vector.broadcast %280 : f32 to vector<1x16x16xf32>
    %287 = arith.mulf %286, %285 : vector<1x16x16xf32>
    %288 = arith.addf %284, %287 : vector<1x16x16xf32>
    %c31 = arith.constant 31 : index
    %289 = memref.load %arg1[%c31] : memref<98xf32, #tpu.memory_space<smem>>
    %c80 = arith.constant 80 : index
    %290 = memref.load %arg1[%c80] : memref<98xf32, #tpu.memory_space<smem>>
    %291 = vector.extract_strided_slice %245 {offsets = [0, 4, 0], sizes = [1, 16, 16], strides = [1, 1, 1]} : vector<1x22x16xf32> to vector<1x16x16xf32>
    %292 = vector.broadcast %289 : f32 to vector<1x16x16xf32>
    %293 = arith.mulf %292, %291 : vector<1x16x16xf32>
    %294 = arith.addf %288, %293 : vector<1x16x16xf32>
    %295 = vector.extract_strided_slice %247 {offsets = [0, 4, 0], sizes = [1, 16, 16], strides = [1, 1, 1]} : vector<1x22x16xf32> to vector<1x16x16xf32>
    %296 = vector.broadcast %290 : f32 to vector<1x16x16xf32>
    %297 = arith.mulf %296, %295 : vector<1x16x16xf32>
    %298 = arith.addf %294, %297 : vector<1x16x16xf32>
    %c38 = arith.constant 38 : index
    %299 = memref.load %arg1[%c38] : memref<98xf32, #tpu.memory_space<smem>>
    %c87 = arith.constant 87 : index
    %300 = memref.load %arg1[%c87] : memref<98xf32, #tpu.memory_space<smem>>
    %301 = vector.extract_strided_slice %245 {offsets = [0, 5, 0], sizes = [1, 16, 16], strides = [1, 1, 1]} : vector<1x22x16xf32> to vector<1x16x16xf32>
    %302 = vector.broadcast %299 : f32 to vector<1x16x16xf32>
    %303 = arith.mulf %302, %301 : vector<1x16x16xf32>
    %304 = arith.addf %298, %303 : vector<1x16x16xf32>
    %305 = vector.extract_strided_slice %247 {offsets = [0, 5, 0], sizes = [1, 16, 16], strides = [1, 1, 1]} : vector<1x22x16xf32> to vector<1x16x16xf32>
    %306 = vector.broadcast %300 : f32 to vector<1x16x16xf32>
    %307 = arith.mulf %306, %305 : vector<1x16x16xf32>
    %308 = arith.addf %304, %307 : vector<1x16x16xf32>
    %c45 = arith.constant 45 : index
    %309 = memref.load %arg1[%c45] : memref<98xf32, #tpu.memory_space<smem>>
    %c94 = arith.constant 94 : index
    %310 = memref.load %arg1[%c94] : memref<98xf32, #tpu.memory_space<smem>>
    %311 = vector.extract_strided_slice %245 {offsets = [0, 6, 0], sizes = [1, 16, 16], strides = [1, 1, 1]} : vector<1x22x16xf32> to vector<1x16x16xf32>
    %312 = vector.broadcast %309 : f32 to vector<1x16x16xf32>
    %313 = arith.mulf %312, %311 : vector<1x16x16xf32>
    %314 = arith.addf %308, %313 : vector<1x16x16xf32>
    %315 = vector.extract_strided_slice %247 {offsets = [0, 6, 0], sizes = [1, 16, 16], strides = [1, 1, 1]} : vector<1x22x16xf32> to vector<1x16x16xf32>
    %316 = vector.broadcast %310 : f32 to vector<1x16x16xf32>
    %317 = arith.mulf %316, %315 : vector<1x16x16xf32>
    %318 = arith.addf %314, %317 : vector<1x16x16xf32>
    %c0_66 = arith.constant 0 : index
    %c0_67 = arith.constant 0 : index
    %c0_68 = arith.constant 0 : index
    %c4 = arith.constant 4 : index
    %319 = vector.load %arg5[%c0_66, %c0_67, %c0_68, %c4] : memref<2x1x22x22xf32, #tpu.memory_space<vmem>>, vector<1x1x22x16xf32>
    %320 = vector.shape_cast %319 : vector<1x1x22x16xf32> to vector<1x22x16xf32>
    %c1_69 = arith.constant 1 : index
    %c0_70 = arith.constant 0 : index
    %c0_71 = arith.constant 0 : index
    %c4_72 = arith.constant 4 : index
    %321 = vector.load %arg5[%c1_69, %c0_70, %c0_71, %c4_72] : memref<2x1x22x22xf32, #tpu.memory_space<vmem>>, vector<1x1x22x16xf32>
    %322 = vector.shape_cast %321 : vector<1x1x22x16xf32> to vector<1x22x16xf32>
    %cst_73 = arith.constant 0.000000e+00 : f32
    %323 = vector.broadcast %cst_73 : f32 to vector<1x16x16xf32>
    %c4_74 = arith.constant 4 : index
    %324 = memref.load %arg1[%c4_74] : memref<98xf32, #tpu.memory_space<smem>>
    %c53 = arith.constant 53 : index
    %325 = memref.load %arg1[%c53] : memref<98xf32, #tpu.memory_space<smem>>
    %326 = vector.extract_strided_slice %320 {offsets = [0, 0, 0], sizes = [1, 16, 16], strides = [1, 1, 1]} : vector<1x22x16xf32> to vector<1x16x16xf32>
    %327 = vector.broadcast %324 : f32 to vector<1x16x16xf32>
    %328 = arith.mulf %327, %326 : vector<1x16x16xf32>
    %329 = arith.addf %323, %328 : vector<1x16x16xf32>
    %330 = vector.extract_strided_slice %322 {offsets = [0, 0, 0], sizes = [1, 16, 16], strides = [1, 1, 1]} : vector<1x22x16xf32> to vector<1x16x16xf32>
    %331 = vector.broadcast %325 : f32 to vector<1x16x16xf32>
    %332 = arith.mulf %331, %330 : vector<1x16x16xf32>
    %333 = arith.addf %329, %332 : vector<1x16x16xf32>
    %c11 = arith.constant 11 : index
    %334 = memref.load %arg1[%c11] : memref<98xf32, #tpu.memory_space<smem>>
    %c60 = arith.constant 60 : index
    %335 = memref.load %arg1[%c60] : memref<98xf32, #tpu.memory_space<smem>>
    %336 = vector.extract_strided_slice %320 {offsets = [0, 1, 0], sizes = [1, 16, 16], strides = [1, 1, 1]} : vector<1x22x16xf32> to vector<1x16x16xf32>
    %337 = vector.broadcast %334 : f32 to vector<1x16x16xf32>
    %338 = arith.mulf %337, %336 : vector<1x16x16xf32>
    %339 = arith.addf %333, %338 : vector<1x16x16xf32>
    %340 = vector.extract_strided_slice %322 {offsets = [0, 1, 0], sizes = [1, 16, 16], strides = [1, 1, 1]} : vector<1x22x16xf32> to vector<1x16x16xf32>
    %341 = vector.broadcast %335 : f32 to vector<1x16x16xf32>
    %342 = arith.mulf %341, %340 : vector<1x16x16xf32>
    %343 = arith.addf %339, %342 : vector<1x16x16xf32>
    %c18 = arith.constant 18 : index
    %344 = memref.load %arg1[%c18] : memref<98xf32, #tpu.memory_space<smem>>
    %c67 = arith.constant 67 : index
    %345 = memref.load %arg1[%c67] : memref<98xf32, #tpu.memory_space<smem>>
    %346 = vector.extract_strided_slice %320 {offsets = [0, 2, 0], sizes = [1, 16, 16], strides = [1, 1, 1]} : vector<1x22x16xf32> to vector<1x16x16xf32>
    %347 = vector.broadcast %344 : f32 to vector<1x16x16xf32>
    %348 = arith.mulf %347, %346 : vector<1x16x16xf32>
    %349 = arith.addf %343, %348 : vector<1x16x16xf32>
    %350 = vector.extract_strided_slice %322 {offsets = [0, 2, 0], sizes = [1, 16, 16], strides = [1, 1, 1]} : vector<1x22x16xf32> to vector<1x16x16xf32>
    %351 = vector.broadcast %345 : f32 to vector<1x16x16xf32>
    %352 = arith.mulf %351, %350 : vector<1x16x16xf32>
    %353 = arith.addf %349, %352 : vector<1x16x16xf32>
    %c25 = arith.constant 25 : index
    %354 = memref.load %arg1[%c25] : memref<98xf32, #tpu.memory_space<smem>>
    %c74 = arith.constant 74 : index
    %355 = memref.load %arg1[%c74] : memref<98xf32, #tpu.memory_space<smem>>
    %356 = vector.extract_strided_slice %320 {offsets = [0, 3, 0], sizes = [1, 16, 16], strides = [1, 1, 1]} : vector<1x22x16xf32> to vector<1x16x16xf32>
    %357 = vector.broadcast %354 : f32 to vector<1x16x16xf32>
    %358 = arith.mulf %357, %356 : vector<1x16x16xf32>
    %359 = arith.addf %353, %358 : vector<1x16x16xf32>
    %360 = vector.extract_strided_slice %322 {offsets = [0, 3, 0], sizes = [1, 16, 16], strides = [1, 1, 1]} : vector<1x22x16xf32> to vector<1x16x16xf32>
    %361 = vector.broadcast %355 : f32 to vector<1x16x16xf32>
    %362 = arith.mulf %361, %360 : vector<1x16x16xf32>
    %363 = arith.addf %359, %362 : vector<1x16x16xf32>
    %c32 = arith.constant 32 : index
    %364 = memref.load %arg1[%c32] : memref<98xf32, #tpu.memory_space<smem>>
    %c81 = arith.constant 81 : index
    %365 = memref.load %arg1[%c81] : memref<98xf32, #tpu.memory_space<smem>>
    %366 = vector.extract_strided_slice %320 {offsets = [0, 4, 0], sizes = [1, 16, 16], strides = [1, 1, 1]} : vector<1x22x16xf32> to vector<1x16x16xf32>
    %367 = vector.broadcast %364 : f32 to vector<1x16x16xf32>
    %368 = arith.mulf %367, %366 : vector<1x16x16xf32>
    %369 = arith.addf %363, %368 : vector<1x16x16xf32>
    %370 = vector.extract_strided_slice %322 {offsets = [0, 4, 0], sizes = [1, 16, 16], strides = [1, 1, 1]} : vector<1x22x16xf32> to vector<1x16x16xf32>
    %371 = vector.broadcast %365 : f32 to vector<1x16x16xf32>
    %372 = arith.mulf %371, %370 : vector<1x16x16xf32>
    %373 = arith.addf %369, %372 : vector<1x16x16xf32>
    %c39 = arith.constant 39 : index
    %374 = memref.load %arg1[%c39] : memref<98xf32, #tpu.memory_space<smem>>
    %c88 = arith.constant 88 : index
    %375 = memref.load %arg1[%c88] : memref<98xf32, #tpu.memory_space<smem>>
    %376 = vector.extract_strided_slice %320 {offsets = [0, 5, 0], sizes = [1, 16, 16], strides = [1, 1, 1]} : vector<1x22x16xf32> to vector<1x16x16xf32>
    %377 = vector.broadcast %374 : f32 to vector<1x16x16xf32>
    %378 = arith.mulf %377, %376 : vector<1x16x16xf32>
    %379 = arith.addf %373, %378 : vector<1x16x16xf32>
    %380 = vector.extract_strided_slice %322 {offsets = [0, 5, 0], sizes = [1, 16, 16], strides = [1, 1, 1]} : vector<1x22x16xf32> to vector<1x16x16xf32>
    %381 = vector.broadcast %375 : f32 to vector<1x16x16xf32>
    %382 = arith.mulf %381, %380 : vector<1x16x16xf32>
    %383 = arith.addf %379, %382 : vector<1x16x16xf32>
    %c46 = arith.constant 46 : index
    %384 = memref.load %arg1[%c46] : memref<98xf32, #tpu.memory_space<smem>>
    %c95 = arith.constant 95 : index
    %385 = memref.load %arg1[%c95] : memref<98xf32, #tpu.memory_space<smem>>
    %386 = vector.extract_strided_slice %320 {offsets = [0, 6, 0], sizes = [1, 16, 16], strides = [1, 1, 1]} : vector<1x22x16xf32> to vector<1x16x16xf32>
    %387 = vector.broadcast %384 : f32 to vector<1x16x16xf32>
    %388 = arith.mulf %387, %386 : vector<1x16x16xf32>
    %389 = arith.addf %383, %388 : vector<1x16x16xf32>
    %390 = vector.extract_strided_slice %322 {offsets = [0, 6, 0], sizes = [1, 16, 16], strides = [1, 1, 1]} : vector<1x22x16xf32> to vector<1x16x16xf32>
    %391 = vector.broadcast %385 : f32 to vector<1x16x16xf32>
    %392 = arith.mulf %391, %390 : vector<1x16x16xf32>
    %393 = arith.addf %389, %392 : vector<1x16x16xf32>
    %c0_75 = arith.constant 0 : index
    %c0_76 = arith.constant 0 : index
    %c0_77 = arith.constant 0 : index
    %c5 = arith.constant 5 : index
    %394 = vector.load %arg5[%c0_75, %c0_76, %c0_77, %c5] : memref<2x1x22x22xf32, #tpu.memory_space<vmem>>, vector<1x1x22x16xf32>
    %395 = vector.shape_cast %394 : vector<1x1x22x16xf32> to vector<1x22x16xf32>
    %c1_78 = arith.constant 1 : index
    %c0_79 = arith.constant 0 : index
    %c0_80 = arith.constant 0 : index
    %c5_81 = arith.constant 5 : index
    %396 = vector.load %arg5[%c1_78, %c0_79, %c0_80, %c5_81] : memref<2x1x22x22xf32, #tpu.memory_space<vmem>>, vector<1x1x22x16xf32>
    %397 = vector.shape_cast %396 : vector<1x1x22x16xf32> to vector<1x22x16xf32>
    %cst_82 = arith.constant 0.000000e+00 : f32
    %398 = vector.broadcast %cst_82 : f32 to vector<1x16x16xf32>
    %c5_83 = arith.constant 5 : index
    %399 = memref.load %arg1[%c5_83] : memref<98xf32, #tpu.memory_space<smem>>
    %c54 = arith.constant 54 : index
    %400 = memref.load %arg1[%c54] : memref<98xf32, #tpu.memory_space<smem>>
    %401 = vector.extract_strided_slice %395 {offsets = [0, 0, 0], sizes = [1, 16, 16], strides = [1, 1, 1]} : vector<1x22x16xf32> to vector<1x16x16xf32>
    %402 = vector.broadcast %399 : f32 to vector<1x16x16xf32>
    %403 = arith.mulf %402, %401 : vector<1x16x16xf32>
    %404 = arith.addf %398, %403 : vector<1x16x16xf32>
    %405 = vector.extract_strided_slice %397 {offsets = [0, 0, 0], sizes = [1, 16, 16], strides = [1, 1, 1]} : vector<1x22x16xf32> to vector<1x16x16xf32>
    %406 = vector.broadcast %400 : f32 to vector<1x16x16xf32>
    %407 = arith.mulf %406, %405 : vector<1x16x16xf32>
    %408 = arith.addf %404, %407 : vector<1x16x16xf32>
    %c12 = arith.constant 12 : index
    %409 = memref.load %arg1[%c12] : memref<98xf32, #tpu.memory_space<smem>>
    %c61 = arith.constant 61 : index
    %410 = memref.load %arg1[%c61] : memref<98xf32, #tpu.memory_space<smem>>
    %411 = vector.extract_strided_slice %395 {offsets = [0, 1, 0], sizes = [1, 16, 16], strides = [1, 1, 1]} : vector<1x22x16xf32> to vector<1x16x16xf32>
    %412 = vector.broadcast %409 : f32 to vector<1x16x16xf32>
    %413 = arith.mulf %412, %411 : vector<1x16x16xf32>
    %414 = arith.addf %408, %413 : vector<1x16x16xf32>
    %415 = vector.extract_strided_slice %397 {offsets = [0, 1, 0], sizes = [1, 16, 16], strides = [1, 1, 1]} : vector<1x22x16xf32> to vector<1x16x16xf32>
    %416 = vector.broadcast %410 : f32 to vector<1x16x16xf32>
    %417 = arith.mulf %416, %415 : vector<1x16x16xf32>
    %418 = arith.addf %414, %417 : vector<1x16x16xf32>
    %c19_84 = arith.constant 19 : index
    %419 = memref.load %arg1[%c19_84] : memref<98xf32, #tpu.memory_space<smem>>
    %c68 = arith.constant 68 : index
    %420 = memref.load %arg1[%c68] : memref<98xf32, #tpu.memory_space<smem>>
    %421 = vector.extract_strided_slice %395 {offsets = [0, 2, 0], sizes = [1, 16, 16], strides = [1, 1, 1]} : vector<1x22x16xf32> to vector<1x16x16xf32>
    %422 = vector.broadcast %419 : f32 to vector<1x16x16xf32>
    %423 = arith.mulf %422, %421 : vector<1x16x16xf32>
    %424 = arith.addf %418, %423 : vector<1x16x16xf32>
    %425 = vector.extract_strided_slice %397 {offsets = [0, 2, 0], sizes = [1, 16, 16], strides = [1, 1, 1]} : vector<1x22x16xf32> to vector<1x16x16xf32>
    %426 = vector.broadcast %420 : f32 to vector<1x16x16xf32>
    %427 = arith.mulf %426, %425 : vector<1x16x16xf32>
    %428 = arith.addf %424, %427 : vector<1x16x16xf32>
    %c26 = arith.constant 26 : index
    %429 = memref.load %arg1[%c26] : memref<98xf32, #tpu.memory_space<smem>>
    %c75 = arith.constant 75 : index
    %430 = memref.load %arg1[%c75] : memref<98xf32, #tpu.memory_space<smem>>
    %431 = vector.extract_strided_slice %395 {offsets = [0, 3, 0], sizes = [1, 16, 16], strides = [1, 1, 1]} : vector<1x22x16xf32> to vector<1x16x16xf32>
    %432 = vector.broadcast %429 : f32 to vector<1x16x16xf32>
    %433 = arith.mulf %432, %431 : vector<1x16x16xf32>
    %434 = arith.addf %428, %433 : vector<1x16x16xf32>
    %435 = vector.extract_strided_slice %397 {offsets = [0, 3, 0], sizes = [1, 16, 16], strides = [1, 1, 1]} : vector<1x22x16xf32> to vector<1x16x16xf32>
    %436 = vector.broadcast %430 : f32 to vector<1x16x16xf32>
    %437 = arith.mulf %436, %435 : vector<1x16x16xf32>
    %438 = arith.addf %434, %437 : vector<1x16x16xf32>
    %c33 = arith.constant 33 : index
    %439 = memref.load %arg1[%c33] : memref<98xf32, #tpu.memory_space<smem>>
    %c82 = arith.constant 82 : index
    %440 = memref.load %arg1[%c82] : memref<98xf32, #tpu.memory_space<smem>>
    %441 = vector.extract_strided_slice %395 {offsets = [0, 4, 0], sizes = [1, 16, 16], strides = [1, 1, 1]} : vector<1x22x16xf32> to vector<1x16x16xf32>
    %442 = vector.broadcast %439 : f32 to vector<1x16x16xf32>
    %443 = arith.mulf %442, %441 : vector<1x16x16xf32>
    %444 = arith.addf %438, %443 : vector<1x16x16xf32>
    %445 = vector.extract_strided_slice %397 {offsets = [0, 4, 0], sizes = [1, 16, 16], strides = [1, 1, 1]} : vector<1x22x16xf32> to vector<1x16x16xf32>
    %446 = vector.broadcast %440 : f32 to vector<1x16x16xf32>
    %447 = arith.mulf %446, %445 : vector<1x16x16xf32>
    %448 = arith.addf %444, %447 : vector<1x16x16xf32>
    %c40 = arith.constant 40 : index
    %449 = memref.load %arg1[%c40] : memref<98xf32, #tpu.memory_space<smem>>
    %c89 = arith.constant 89 : index
    %450 = memref.load %arg1[%c89] : memref<98xf32, #tpu.memory_space<smem>>
    %451 = vector.extract_strided_slice %395 {offsets = [0, 5, 0], sizes = [1, 16, 16], strides = [1, 1, 1]} : vector<1x22x16xf32> to vector<1x16x16xf32>
    %452 = vector.broadcast %449 : f32 to vector<1x16x16xf32>
    %453 = arith.mulf %452, %451 : vector<1x16x16xf32>
    %454 = arith.addf %448, %453 : vector<1x16x16xf32>
    %455 = vector.extract_strided_slice %397 {offsets = [0, 5, 0], sizes = [1, 16, 16], strides = [1, 1, 1]} : vector<1x22x16xf32> to vector<1x16x16xf32>
    %456 = vector.broadcast %450 : f32 to vector<1x16x16xf32>
    %457 = arith.mulf %456, %455 : vector<1x16x16xf32>
    %458 = arith.addf %454, %457 : vector<1x16x16xf32>
    %c47 = arith.constant 47 : index
    %459 = memref.load %arg1[%c47] : memref<98xf32, #tpu.memory_space<smem>>
    %c96 = arith.constant 96 : index
    %460 = memref.load %arg1[%c96] : memref<98xf32, #tpu.memory_space<smem>>
    %461 = vector.extract_strided_slice %395 {offsets = [0, 6, 0], sizes = [1, 16, 16], strides = [1, 1, 1]} : vector<1x22x16xf32> to vector<1x16x16xf32>
    %462 = vector.broadcast %459 : f32 to vector<1x16x16xf32>
    %463 = arith.mulf %462, %461 : vector<1x16x16xf32>
    %464 = arith.addf %458, %463 : vector<1x16x16xf32>
    %465 = vector.extract_strided_slice %397 {offsets = [0, 6, 0], sizes = [1, 16, 16], strides = [1, 1, 1]} : vector<1x22x16xf32> to vector<1x16x16xf32>
    %466 = vector.broadcast %460 : f32 to vector<1x16x16xf32>
    %467 = arith.mulf %466, %465 : vector<1x16x16xf32>
    %468 = arith.addf %464, %467 : vector<1x16x16xf32>
    %c0_85 = arith.constant 0 : index
    %c0_86 = arith.constant 0 : index
    %c0_87 = arith.constant 0 : index
    %c6 = arith.constant 6 : index
    %469 = vector.load %arg5[%c0_85, %c0_86, %c0_87, %c6] : memref<2x1x22x22xf32, #tpu.memory_space<vmem>>, vector<1x1x22x16xf32>
    %470 = vector.shape_cast %469 : vector<1x1x22x16xf32> to vector<1x22x16xf32>
    %c1_88 = arith.constant 1 : index
    %c0_89 = arith.constant 0 : index
    %c0_90 = arith.constant 0 : index
    %c6_91 = arith.constant 6 : index
    %471 = vector.load %arg5[%c1_88, %c0_89, %c0_90, %c6_91] : memref<2x1x22x22xf32, #tpu.memory_space<vmem>>, vector<1x1x22x16xf32>
    %472 = vector.shape_cast %471 : vector<1x1x22x16xf32> to vector<1x22x16xf32>
    %cst_92 = arith.constant 0.000000e+00 : f32
    %473 = vector.broadcast %cst_92 : f32 to vector<1x16x16xf32>
    %c6_93 = arith.constant 6 : index
    %474 = memref.load %arg1[%c6_93] : memref<98xf32, #tpu.memory_space<smem>>
    %c55 = arith.constant 55 : index
    %475 = memref.load %arg1[%c55] : memref<98xf32, #tpu.memory_space<smem>>
    %476 = vector.extract_strided_slice %470 {offsets = [0, 0, 0], sizes = [1, 16, 16], strides = [1, 1, 1]} : vector<1x22x16xf32> to vector<1x16x16xf32>
    %477 = vector.broadcast %474 : f32 to vector<1x16x16xf32>
    %478 = arith.mulf %477, %476 : vector<1x16x16xf32>
    %479 = arith.addf %473, %478 : vector<1x16x16xf32>
    %480 = vector.extract_strided_slice %472 {offsets = [0, 0, 0], sizes = [1, 16, 16], strides = [1, 1, 1]} : vector<1x22x16xf32> to vector<1x16x16xf32>
    %481 = vector.broadcast %475 : f32 to vector<1x16x16xf32>
    %482 = arith.mulf %481, %480 : vector<1x16x16xf32>
    %483 = arith.addf %479, %482 : vector<1x16x16xf32>
    %c13 = arith.constant 13 : index
    %484 = memref.load %arg1[%c13] : memref<98xf32, #tpu.memory_space<smem>>
    %c62 = arith.constant 62 : index
    %485 = memref.load %arg1[%c62] : memref<98xf32, #tpu.memory_space<smem>>
    %486 = vector.extract_strided_slice %470 {offsets = [0, 1, 0], sizes = [1, 16, 16], strides = [1, 1, 1]} : vector<1x22x16xf32> to vector<1x16x16xf32>
    %487 = vector.broadcast %484 : f32 to vector<1x16x16xf32>
    %488 = arith.mulf %487, %486 : vector<1x16x16xf32>
    %489 = arith.addf %483, %488 : vector<1x16x16xf32>
    %490 = vector.extract_strided_slice %472 {offsets = [0, 1, 0], sizes = [1, 16, 16], strides = [1, 1, 1]} : vector<1x22x16xf32> to vector<1x16x16xf32>
    %491 = vector.broadcast %485 : f32 to vector<1x16x16xf32>
    %492 = arith.mulf %491, %490 : vector<1x16x16xf32>
    %493 = arith.addf %489, %492 : vector<1x16x16xf32>
    %c20 = arith.constant 20 : index
    %494 = memref.load %arg1[%c20] : memref<98xf32, #tpu.memory_space<smem>>
    %c69 = arith.constant 69 : index
    %495 = memref.load %arg1[%c69] : memref<98xf32, #tpu.memory_space<smem>>
    %496 = vector.extract_strided_slice %470 {offsets = [0, 2, 0], sizes = [1, 16, 16], strides = [1, 1, 1]} : vector<1x22x16xf32> to vector<1x16x16xf32>
    %497 = vector.broadcast %494 : f32 to vector<1x16x16xf32>
    %498 = arith.mulf %497, %496 : vector<1x16x16xf32>
    %499 = arith.addf %493, %498 : vector<1x16x16xf32>
    %500 = vector.extract_strided_slice %472 {offsets = [0, 2, 0], sizes = [1, 16, 16], strides = [1, 1, 1]} : vector<1x22x16xf32> to vector<1x16x16xf32>
    %501 = vector.broadcast %495 : f32 to vector<1x16x16xf32>
    %502 = arith.mulf %501, %500 : vector<1x16x16xf32>
    %503 = arith.addf %499, %502 : vector<1x16x16xf32>
    %c27 = arith.constant 27 : index
    %504 = memref.load %arg1[%c27] : memref<98xf32, #tpu.memory_space<smem>>
    %c76 = arith.constant 76 : index
    %505 = memref.load %arg1[%c76] : memref<98xf32, #tpu.memory_space<smem>>
    %506 = vector.extract_strided_slice %470 {offsets = [0, 3, 0], sizes = [1, 16, 16], strides = [1, 1, 1]} : vector<1x22x16xf32> to vector<1x16x16xf32>
    %507 = vector.broadcast %504 : f32 to vector<1x16x16xf32>
    %508 = arith.mulf %507, %506 : vector<1x16x16xf32>
    %509 = arith.addf %503, %508 : vector<1x16x16xf32>
    %510 = vector.extract_strided_slice %472 {offsets = [0, 3, 0], sizes = [1, 16, 16], strides = [1, 1, 1]} : vector<1x22x16xf32> to vector<1x16x16xf32>
    %511 = vector.broadcast %505 : f32 to vector<1x16x16xf32>
    %512 = arith.mulf %511, %510 : vector<1x16x16xf32>
    %513 = arith.addf %509, %512 : vector<1x16x16xf32>
    %c34 = arith.constant 34 : index
    %514 = memref.load %arg1[%c34] : memref<98xf32, #tpu.memory_space<smem>>
    %c83 = arith.constant 83 : index
    %515 = memref.load %arg1[%c83] : memref<98xf32, #tpu.memory_space<smem>>
    %516 = vector.extract_strided_slice %470 {offsets = [0, 4, 0], sizes = [1, 16, 16], strides = [1, 1, 1]} : vector<1x22x16xf32> to vector<1x16x16xf32>
    %517 = vector.broadcast %514 : f32 to vector<1x16x16xf32>
    %518 = arith.mulf %517, %516 : vector<1x16x16xf32>
    %519 = arith.addf %513, %518 : vector<1x16x16xf32>
    %520 = vector.extract_strided_slice %472 {offsets = [0, 4, 0], sizes = [1, 16, 16], strides = [1, 1, 1]} : vector<1x22x16xf32> to vector<1x16x16xf32>
    %521 = vector.broadcast %515 : f32 to vector<1x16x16xf32>
    %522 = arith.mulf %521, %520 : vector<1x16x16xf32>
    %523 = arith.addf %519, %522 : vector<1x16x16xf32>
    %c41 = arith.constant 41 : index
    %524 = memref.load %arg1[%c41] : memref<98xf32, #tpu.memory_space<smem>>
    %c90 = arith.constant 90 : index
    %525 = memref.load %arg1[%c90] : memref<98xf32, #tpu.memory_space<smem>>
    %526 = vector.extract_strided_slice %470 {offsets = [0, 5, 0], sizes = [1, 16, 16], strides = [1, 1, 1]} : vector<1x22x16xf32> to vector<1x16x16xf32>
    %527 = vector.broadcast %524 : f32 to vector<1x16x16xf32>
    %528 = arith.mulf %527, %526 : vector<1x16x16xf32>
    %529 = arith.addf %523, %528 : vector<1x16x16xf32>
    %530 = vector.extract_strided_slice %472 {offsets = [0, 5, 0], sizes = [1, 16, 16], strides = [1, 1, 1]} : vector<1x22x16xf32> to vector<1x16x16xf32>
    %531 = vector.broadcast %525 : f32 to vector<1x16x16xf32>
    %532 = arith.mulf %531, %530 : vector<1x16x16xf32>
    %533 = arith.addf %529, %532 : vector<1x16x16xf32>
    %c48 = arith.constant 48 : index
    %534 = memref.load %arg1[%c48] : memref<98xf32, #tpu.memory_space<smem>>
    %c97 = arith.constant 97 : index
    %535 = memref.load %arg1[%c97] : memref<98xf32, #tpu.memory_space<smem>>
    %536 = vector.extract_strided_slice %470 {offsets = [0, 6, 0], sizes = [1, 16, 16], strides = [1, 1, 1]} : vector<1x22x16xf32> to vector<1x16x16xf32>
    %537 = vector.broadcast %534 : f32 to vector<1x16x16xf32>
    %538 = arith.mulf %537, %536 : vector<1x16x16xf32>
    %539 = arith.addf %533, %538 : vector<1x16x16xf32>
    %540 = vector.extract_strided_slice %472 {offsets = [0, 6, 0], sizes = [1, 16, 16], strides = [1, 1, 1]} : vector<1x22x16xf32> to vector<1x16x16xf32>
    %541 = vector.broadcast %535 : f32 to vector<1x16x16xf32>
    %542 = arith.mulf %541, %540 : vector<1x16x16xf32>
    %543 = arith.addf %539, %542 : vector<1x16x16xf32>
    %544 = arith.addf %93, %168 : vector<1x16x16xf32>
    %545 = arith.addf %243, %318 : vector<1x16x16xf32>
    %546 = arith.addf %544, %545 : vector<1x16x16xf32>
    %547 = arith.addf %393, %468 : vector<1x16x16xf32>
    %548 = arith.addf %547, %543 : vector<1x16x16xf32>
    %549 = arith.addf %546, %548 : vector<1x16x16xf32>
    %c0_94 = arith.constant 0 : index
    %550 = memref.load %arg2[%c0_94] : memref<1xf32, #tpu.memory_space<smem>>
    %551 = vector.broadcast %550 : f32 to vector<1x16x16xf32>
    %552 = arith.addf %549, %551 : vector<1x16x16xf32>
    %553 = arith.negf %552 : vector<1x16x16xf32>
    %554 = math.exp %553 : vector<1x16x16xf32>
    %cst_95 = arith.constant 1.000000e+00 : f32
    %555 = vector.broadcast %cst_95 : f32 to vector<1x16x16xf32>
    %556 = arith.addf %555, %554 : vector<1x16x16xf32>
    %557 = arith.divf %555, %556 : vector<1x16x16xf32>
    %558 = vector.shape_cast %557 : vector<1x16x16xf32> to vector<1x1x256xf32>
    %c0_96 = arith.constant 0 : index
    %c0_97 = arith.constant 0 : index
    %c0_98 = arith.constant 0 : index
    %559 = vector.load %arg3[%c0_96, %c0_97, %c0_98] : memref<1x4x256xf32, #tpu.memory_space<vmem>>, vector<1x4x256xf32>
    %560 = vector.broadcast %558 : vector<1x1x256xf32> to vector<1x4x256xf32>
    %561 = arith.mulf %559, %560 : vector<1x4x256xf32>
    %c0_99 = arith.constant 0 : index
    %c0_100 = arith.constant 0 : index
    %c0_101 = arith.constant 0 : index
    %562 = vector.load %arg4[%c0_99, %c0_100, %c0_101] : memref<1x4x256xf32, #tpu.memory_space<vmem>>, vector<1x4x256xf32>
    tpu.vector_store %arg4[%c0_99, %c0_100, %c0_101], %561 {strides = array<i32>} : memref<1x4x256xf32, #tpu.memory_space<vmem>>, vector<1x4x256xf32>,
    return
  }
  func.func @transform_0(%arg0: i32) -> i32 {
    %c0_i32 = arith.constant 0 : i32
    %c0_i32_0 = arith.constant 0 : i32
    return %c0_i32 : i32
  }
  func.func @transform_1(%arg0: i32) -> i32 {
    %c0_i32 = arith.constant 0 : i32
    %c0_i32_0 = arith.constant 0 : i32
    return %c0_i32 : i32
  }
  func.func @transform_2(%arg0: i32) -> (i32, i32, i32) {
    %c0_i32 = arith.constant 0 : i32
    %c0_i32_0 = arith.constant 0 : i32
    %c0_i32_1 = arith.constant 0 : i32
    return %arg0, %c0_i32, %c0_i32_0 : i32, i32, i32
  }
  func.func @transform_3(%arg0: i32) -> (i32, i32, i32) {
    %c0_i32 = arith.constant 0 : i32
    %c0_i32_0 = arith.constant 0 : i32
    %c0_i32_1 = arith.constant 0 : i32
    return %arg0, %c0_i32, %c0_i32_0 : i32, i32, i32
  }
}

</mosaic_0001>

<llo_original>
// kernel: tpu_custom_call.1
$region0: #{tpu_custom_call.1}
  #allocation0 [shape = 'u32[]', space=smem, size = 0x4, offset = 0x4, fixed_abs, tag = 'smem constant byte address 0x4 - core index']
  #allocation1 [shape = 'u32[144,128]{1,0:T(1,128)}', space=vmem, size = 0x12000, scoped, tag = 'internal scratch']
  #allocation2 [shape = 'f32[2,1,22,22]{3,2,1,0:T(8,128)}', space=vmem, size = 0x6000, scoped, tag = 'scratch operand']
  #allocation3 [shape = 'f32[1]{0:T(128)S(6)}', space=smem, size = 0x200, scoped, tag = 'scoped memory for tpu_custom_call.1']
  %s0 = inlined_call_operand.vmem [shape: f32[98], index: 0, kind: input, shape index: {}]
  %s1 = inlined_call_operand.<no memory space> [shape: f32[1], index: 1, kind: input, shape index: {}]
  %s2 = inlined_call_operand.hbm [shape: f32[2,4,256], index: 2, kind: input, shape index: {}]
  %s3 = inlined_call_operand.hbm [shape: f32[2,4,256], index: 3, kind: output, shape index: {}]
  %s4 = sld [smem:[#allocation0]]
  $region53: #{tpu_custom_call.1} parent=0
    _
  %s6 = ssub.s32 1, %s4
  %s7 = scalar_select 0, %s6, %s4
  %8 = sst [smem:[#allocation3]] %s1
  $region1: #{tpu_custom_call.1} parent=0
    #allocation4 [shape = 'u8[512]{0}', space=smem, size = 0x200, scoped, tag = 'input window, operand 0, single buffered']
    #allocation5 [shape = 's32[2]{0}', space=sflag, size = 0x8, scoped, tag = 'scoped memory for tpu_custom_call.1']
    #allocation6 [shape = 's32[2]{0}', space=sflag, size = 0x8, scoped, tag = 'scoped memory for tpu_custom_call.1']
    #allocation7 [shape = 's32[2]{0}', space=sflag, size = 0x8, scoped, tag = 'scoped memory for tpu_custom_call.1']
    #allocation8 [shape = 'u8[8192]{0}', space=vmem, size = 0x2000, scoped, tag = 'input window, operand 2']
    #allocation9 [shape = 'u8[8192]{0}', space=vmem, size = 0x2000, scoped, tag = 'output window, operand 0']
    %9 = vsyncpa [#allocation7], 0
    %10 = vsyncpa [#allocation5], 0
    %s11 = scalar_lea.sflag [#allocation5], 1
    %12 = vsyncpa %s11, 0
    %13 = vsyncpa [#allocation6], 0
    %s14 = scalar_lea.sflag [#allocation6], 1
    %15 = vsyncpa %s14, 0
    loop: start=0, step=1, limit=4
    $region2: #{tpu_custom_call.1} parent=1 // loop_pre_header
      _
    $region3: #{tpu_custom_call.1} parent=1 // loop_header
      %s17 = sphi 0, %s21
      %p18 = scmp.ge.s32.totalorder %s17, 4
      %s25 = sphi 0, %s25
      %s27 = sphi 0, %s25
      %s28 = sphi 0, %s27
      %s42 = sphi 0, %s28
      %s46 = sphi 0, %s46
      %s48 = sphi 0, %s46
      %s49 = sphi 0, %s48
      %s63 = sphi 0, %s49
      %s69 = sphi 0, %s71
      %s72 = sphi 0, %s69
      %s73 = sphi 0, %s72
      %s89 = sphi 0, %s73
      %s95 = sphi 0, %s97
      %s98 = sphi 0, %s95
      %s99 = sphi 0, %s98
      %s115 = sphi 0, %s99
    $region4: #{tpu_custom_call.1} parent=1 // loop_header_branch
      %20 = sbr.rel (%p18) target = $region8
    $region5: #{tpu_custom_call.1} parent=1 // loop_body
      %s22 = ssub.s32 %s17, 1
      %s23 = ssub.s32 %s17, 2
      %s24 = sadd.s32 %s17, 1
      %s26 = sadd.s32 %s25, 1
      %p29 = scmp.eq.s32.totalorder %s17, 1
      %p30 = scmp.ne.s32.totalorder %s25, %s27
      %p31 = scmp.eq.s32.totalorder %s17, 0
      %p32 = por %p30, %p31
      %p33 = scmp.ne.s32.totalorder %s25, %s27
      %p34 = scmp.eq.s32.totalorder %s22, 1
      %p35 = por %p33, %p34
      %p36 = scmp.ne.s32.totalorder %s27, %s28
      %p37 = scmp.eq.s32.totalorder %s22, 0
      %p38 = por %p36, %p37
      %p39 = scmp.ne.s32.totalorder %s27, %s28
      %p40 = scmp.eq.s32.totalorder %s23, 1
      %p41 = por %p39, %p40
      %p43 = scmp.ne.s32.totalorder %s28, %s42
      %p44 = scmp.eq.s32.totalorder %s23, 0
      %p45 = por %p43, %p44
      %s47 = sadd.s32 %s46, 1
      %p50 = scmp.eq.s32.totalorder %s17, 1
      %p51 = scmp.ne.s32.totalorder %s46, %s48
      %p52 = scmp.eq.s32.totalorder %s17, 0
      %p53 = por %p51, %p52
      %p54 = scmp.ne.s32.totalorder %s46, %s48
      %p55 = scmp.eq.s32.totalorder %s22, 1
      %p56 = por %p54, %p55
      %p57 = scmp.ne.s32.totalorder %s48, %s49
      %p58 = scmp.eq.s32.totalorder %s22, 0
      %p59 = por %p57, %p58
      %p60 = scmp.ne.s32.totalorder %s48, %s49
      %p61 = scmp.eq.s32.totalorder %s23, 1
      %p62 = por %p60, %p61
      %p64 = scmp.ne.s32.totalorder %s49, %s63
      %p65 = scmp.eq.s32.totalorder %s23, 0
      %p66 = por %p64, %p65
      %s67 = ssub.s32 %s17, %s24
      %p68 = scmp.eq.s32.totalorder %s67, 0
      %s70 = sadd.s32 %s69, 1
      %s71 = scalar_select %p68, %s69, %s70
      %p74 = pneg %p68
      %p75 = scmp.eq.s32.totalorder %s17, 1
      %p76 = por %p74, %p75
      %p77 = scmp.ne.s32.totalorder %s69, %s72
      %p78 = scmp.eq.s32.totalorder %s17, 0
      %p79 = por %p77, %p78
      %p80 = scmp.ne.s32.totalorder %s69, %s72
      %p81 = scmp.eq.s32.totalorder %s22, 1
      %p82 = por %p80, %p81
      %p83 = scmp.ne.s32.totalorder %s72, %s73
      %p84 = scmp.eq.s32.totalorder %s22, 0
      %p85 = por %p83, %p84
      %p86 = scmp.ne.s32.totalorder %s72, %s73
      %p87 = scmp.eq.s32.totalorder %s23, 1
      %p88 = por %p86, %p87
      %p90 = scmp.ne.s32.totalorder %s73, %s89
      %p91 = scmp.eq.s32.totalorder %s23, 0
      %p92 = por %p90, %p91
      %s93 = ssub.s32 %s17, %s24
      %p94 = scmp.eq.s32.totalorder %s93, 0
      %s96 = sadd.s32 %s95, 1
      %s97 = scalar_select %p94, %s95, %s96
      %p100 = pneg %p94
      %p101 = scmp.eq.s32.totalorder %s17, 1
      %p102 = por %p100, %p101
      %p103 = scmp.ne.s32.totalorder %s95, %s98
      %p104 = scmp.eq.s32.totalorder %s17, 0
      %p105 = por %p103, %p104
      %p106 = scmp.ne.s32.totalorder %s95, %s98
      %p107 = scmp.eq.s32.totalorder %s22, 1
      %p108 = por %p106, %p107
      %p109 = scmp.ne.s32.totalorder %s98, %s99
      %p110 = scmp.eq.s32.totalorder %s22, 0
      %p111 = por %p109, %p110
      %p112 = scmp.ne.s32.totalorder %s98, %s99
      %p113 = scmp.eq.s32.totalorder %s23, 1
      %p114 = por %p112, %p113
      %p116 = scmp.ne.s32.totalorder %s99, %s115
      %p117 = scmp.eq.s32.totalorder %s23, 0
      %p118 = por %p116, %p117
      %p119 = scmp.le.s32.totalorder 1, %s17
      %p120 = scmp.lt.s32.totalorder %s17, 3
      %p121 = pnand %p119, %p120
      %p122 = pneg %p121
      // Predicated region
      $region9: #{tpu_custom_call.1} parent=5 // pred_check
        _
      $region10: #{tpu_custom_call.1} parent=5 // pred_check_branch
        %124 = sbr.rel (%p121) target = $region12
      $region11: #{tpu_custom_call.1} parent=5 // pred_region
        %s125 = ssub.s32 %s17, 1
        // Predicated region
        $region13: #{tpu_custom_call.1} parent=11 // pred_check
          %p126 = pneg %p38
        $region14: #{tpu_custom_call.1} parent=11 // pred_check_branch
          %128 = sbr.rel (%p126) target = $region16
        $region15: #{tpu_custom_call.1} parent=11 // pred_region
          %s130 = ssub.s32 16, 16
          %131 = vsyncadd [#allocation7], %s130
          %s133 = sshll.u32 %s0, 4
          %s134 = int_to_ptr.vmem [resolvable:$true] %s133
          %136 = dma.vmem_to_smem %s134, 16, [#allocation4], [#allocation7]
        $region16: #{tpu_custom_call.1} parent=11 // pred_fallthru
          _
        // Predicated region
        $region17: #{tpu_custom_call.1} parent=11 // pred_check
          %p137 = pneg %p59
        $region18: #{tpu_custom_call.1} parent=11 // pred_check_branch
          %139 = sbr.rel (%p137) target = $region20
        $region19: #{tpu_custom_call.1} parent=11 // pred_region
          _
        $region20: #{tpu_custom_call.1} parent=11 // pred_fallthru
          _
      $region12: #{tpu_custom_call.1} parent=5 // pred_fallthru
        _
      %p140 = scmp.lt.s32.totalorder %s17, 2
      // Predicated region
      $region21: #{tpu_custom_call.1} parent=5 // pred_check
        %p141 = pneg %p140
      $region22: #{tpu_custom_call.1} parent=5 // pred_check_branch
        %143 = sbr.rel (%p141) target = $region24
      $region23: #{tpu_custom_call.1} parent=5 // pred_region
        // Predicated region
        $region25: #{tpu_custom_call.1} parent=23 // pred_check
          %p144 = pneg %p79
        $region26: #{tpu_custom_call.1} parent=23 // pred_check_branch
          %146 = sbr.rel (%p144) target = $region28
        $region27: #{tpu_custom_call.1} parent=23 // pred_region
          %s147 = sand.u32 %s69, 1
          %s148 = scalar_lea.sflag [#allocation5], %s147
          %s149 = sand.u32 %s69, 1
          %s150 = smul.addr %s149, 8
          %s151 = scalar_lea.vmem [#allocation8], %s150
          %s153 = ssub.s32 128, 128
          %154 = vsyncadd %s148, %s153
          %s155 = smul.addr %s17, 2
          %s156 = smul.addr %s155, 64
          %s157 = scalar_lea.hbm %s2, %s156
          %s159 = sshll.u32 %s151, 4
          %s160 = int_to_ptr.vmem [resolvable:$true] %s159
          %162 = dma.hbm_to_vmem [thread:$0]  %s157, 128, %s160, %s148
        $region28: #{tpu_custom_call.1} parent=23 // pred_fallthru
          _
      $region24: #{tpu_custom_call.1} parent=5 // pred_fallthru
        _
      %p163 = scmp.le.s32.totalorder 1, %s17
      %p164 = scmp.lt.s32.totalorder %s17, 3
      %p165 = pnand %p163, %p164
      %p166 = pneg %p165
      // Predicated region
      $region29: #{tpu_custom_call.1} parent=5 // pred_check
        _
      $region30: #{tpu_custom_call.1} parent=5 // pred_check_branch
        %168 = sbr.rel (%p165) target = $region32
      $region31: #{tpu_custom_call.1} parent=5 // pred_region
        %s169 = ssub.s32 %s17, 1
        // Predicated region
        $region33: #{tpu_custom_call.1} parent=31 // pred_check
          %p170 = pneg %p38
        $region34: #{tpu_custom_call.1} parent=31 // pred_check_branch
          %172 = sbr.rel (%p170) target = $region36
        $region35: #{tpu_custom_call.1} parent=31 // pred_region
          %173 = dma.done [#allocation7], 16
        $region36: #{tpu_custom_call.1} parent=31 // pred_fallthru
          _
        %s174 = sand.u32 %s72, 1
        %s175 = scalar_lea.sflag [#allocation5], %s174
        %s176 = sand.u32 %s72, 1
        %s177 = smul.addr %s176, 8
        %s178 = scalar_lea.vmem [#allocation8], %s177
        // Predicated region
        $region37: #{tpu_custom_call.1} parent=31 // pred_check
          %p179 = pneg %p85
        $region38: #{tpu_custom_call.1} parent=31 // pred_check_branch
          %181 = sbr.rel (%p179) target = $region40
        $region39: #{tpu_custom_call.1} parent=31 // pred_region
          %182 = dma.done %s175, 128
        $region40: #{tpu_custom_call.1} parent=31 // pred_fallthru
          _
        %183 = sfence
        %p184 = pneg %p38
        %p185 = pneg %p35
        %p186 = pneg %p59
        %p187 = pneg %p56
        %s188 = sand.u32 %s72, 1
        %s189 = scalar_lea.sflag [#allocation5], %s188
        %s190 = sand.u32 %s72, 1
        %s191 = smul.addr %s190, 8
        %s192 = scalar_lea.vmem [#allocation8], %s191
        %p193 = pneg %p85
        %p194 = pneg %p82
        %p195 = pneg %p111
        %p196 = pneg %p108
        %s197 = sand.u32 %s98, 1
        %s198 = scalar_lea.sflag [#allocation6], %s197
        %s199 = sand.u32 %s98, 1
        %s200 = smul.addr %s199, 8
        %s201 = scalar_lea.vmem [#allocation9], %s200
        %v202 = vld [vmem:[%s178] sm:$0xff]
        %v204 = vcombine.high %v202, %v202
        %vm206 = vcmask 1043456
        %v207 = vsel %vm206, %v202, 0.0
        %v208 = vrot.slane %v207, 4
        %v209 = vadd.f32 %v207, %v208
        %v210 = vrot.slane %v209, 2
        %v211 = vadd.f32 %v209, %v210
        %v212 = vrot.slane %v211, 1
        %v213 = vadd.f32 %v211, %v212
        %v214 = vsel %vm206, %v204, 0.0
        %v215 = vrot.slane %v214, 4
        %v216 = vadd.f32 %v214, %v215
        %v217 = vrot.slane %v216, 2
        %v218 = vadd.f32 %v216, %v217
        %v219 = vrot.slane %v218, 1
        %v220 = vadd.f32 %v218, %v219
        %v221 = vrcp.pop 4.0
        %v222 = vmul.f32 %v213, %v221
        %v223 = vmul.f32 %v220, %v221
        %v224 = vsel %vm206, %v202, -inf
        %v225 = vrot.slane %v224, 4
        %v226 = vmax.f32 %v224, %v225
        %v227 = vrot.slane %v226, 2
        %v228 = vmax.f32 %v226, %v227
        %v229 = vrot.slane %v228, 1
        %v230 = vmax.f32 %v228, %v229
        %v231 = vsel %vm206, %v204, -inf
        %v232 = vrot.slane %v231, 4
        %v233 = vmax.f32 %v231, %v232
        %v234 = vrot.slane %v233, 2
        %v235 = vmax.f32 %v233, %v234
        %v236 = vrot.slane %v235, 1
        %v237 = vmax.f32 %v235, %v236
        %vm238 = vcmask 174080
        %239 = vst.msk [vmem:[#allocation2] sm:$0x7] %vm238, 0.0
        %240 = vst.msk [vmem:[#allocation2 + $0x18] sm:$0x7] %vm238, 0.0
        %241 = vst.msk [vmem:[#allocation2 + $0x13] sm:$0x7] %vm238, 0.0
        %242 = vst.msk [vmem:[#allocation2 + $0x2b] sm:$0x7] %vm238, 0.0
        %vm243 = vcmask 23552
        %244 = vst.msk [vmem:[#allocation2] sm:$0xff] %vm243, 0.0
        %245 = vst.msk [vmem:[#allocation2 + $0x8] sm:$0xff] %vm243, 0.0
        %vm246 = vcmask 21504
        %247 = vst.msk [vmem:[#allocation2 + $0x10] sm:$0x3f] %vm246, 0.0
        %248 = vst.msk [vmem:[#allocation2 + $0x18] sm:$0xff] %vm243, 0.0
        %249 = vst.msk [vmem:[#allocation2 + $0x20] sm:$0xff] %vm243, 0.0
        %250 = vst.msk [vmem:[#allocation2 + $0x28] sm:$0x3f] %vm246, 0.0
        %vm251 = vcmask 179352
        %252 = vst.msk [vmem:[#allocation2] sm:$0xff] %vm251, 0.0
        %253 = vst.msk [vmem:[#allocation2 + $0x8] sm:$0xff] %vm251, 0.0
        %vm254 = vcmask 177304
        %255 = vst.msk [vmem:[#allocation2 + $0x10] sm:$0x3f] %vm254, 0.0
        %256 = vst.msk [vmem:[#allocation2 + $0x18] sm:$0xff] %vm251, 0.0
        %257 = vst.msk [vmem:[#allocation2 + $0x20] sm:$0xff] %vm251, 0.0
        %258 = vst.msk [vmem:[#allocation2 + $0x28] sm:$0x3f] %vm254, 0.0
        %260 = vrot.lane.b32.xlu0 %v222, 112
        %v261 = vpop.permute.xlu0 %260
        %263 = vrot.lane.b32.xlu0 %v222, 96
        %v264 = vpop.permute.xlu0 %263
        %266 = vrot.lane.b32.xlu0 %v222, 80
        %v267 = vpop.permute.xlu0 %266
        %269 = vrot.lane.b32.xlu0 %v222, 64
        %v270 = vpop.permute.xlu0 %269
        %272 = vrot.lane.b32.xlu0 %v222, 48
        %v273 = vpop.permute.xlu0 %272
        %275 = vrot.lane.b32.xlu0 %v222, 32
        %v276 = vpop.permute.xlu0 %275
        %278 = vrot.lane.b32.xlu0 %v222, 16
        %v279 = vpop.permute.xlu0 %278
        %282 = vrot.lane.b32.xlu0 %v223, 112
        %v283 = vpop.permute.xlu0 %282
        %285 = vrot.lane.b32.xlu0 %v223, 96
        %v286 = vpop.permute.xlu0 %285
        %288 = vrot.lane.b32.xlu0 %v223, 80
        %v289 = vpop.permute.xlu0 %288
        %291 = vrot.lane.b32.xlu0 %v223, 64
        %v292 = vpop.permute.xlu0 %291
        %294 = vrot.lane.b32.xlu0 %v223, 48
        %v295 = vpop.permute.xlu0 %294
        %297 = vrot.lane.b32.xlu0 %v223, 32
        %v298 = vpop.permute.xlu0 %297
        %300 = vrot.lane.b32.xlu0 %v223, 16
        %v301 = vpop.permute.xlu0 %300
        %v303 = vcombine.low %v222, %v264
        %v305 = vunpack.c.l.s4 1983009808
        %v306 = vunpack.c.0.s8 %v305
        %v307 = vlaneseq
        %v308 = vshrl.u32 %v307, 7
        %v309 = vsub.s32 %v306, %v308
        %v310 = vrot.slane %v303, %v309
        %v311 = vcombine.low %v261, %v267
        %v313 = vunpack.c.l.s4 1983009808
        %v314 = vunpack.c.0.s8 %v313
        %v315 = vlaneseq
        %v316 = vshrl.u32 %v315, 7
        %v317 = vsub.s32 %v314, %v316
        %v318 = vrot.slane %v311, %v317
        %v319 = vcombine.low %v270, %v276
        %v321 = vunpack.c.l.s4 1983009808
        %v322 = vunpack.c.0.s8 %v321
        %v323 = vlaneseq
        %v324 = vshrl.u32 %v323, 7
        %v325 = vsub.s32 %v322, %v324
        %v326 = vrot.slane %v319, %v325
        %v327 = vcombine.low %v273, %v279
        %v329 = vunpack.c.l.s4 1983009808
        %v330 = vunpack.c.0.s8 %v329
        %v331 = vlaneseq
        %v332 = vshrl.u32 %v331, 7
        %v333 = vsub.s32 %v330, %v332
        %v334 = vrot.slane %v327, %v333
        %v335 = vcombine.low %v310, %v318
        %v337 = vunpack.c.l.s4 1934713408
        %v338 = vunpack.c.0.s8 %v337
        %v339 = vlaneseq
        %v340 = vshrl.u32 %v339, 7
        %v341 = vsub.s32 %v338, %v340
        %v342 = vrot.slane %v335, %v341
        %v343 = vcombine.low %v326, %v334
        %v345 = vunpack.c.l.s4 1934713408
        %v346 = vunpack.c.0.s8 %v345
        %v347 = vlaneseq
        %v348 = vshrl.u32 %v347, 7
        %v349 = vsub.s32 %v346, %v348
        %v350 = vrot.slane %v343, %v349
        %v351 = vcombine.low %v342, %v350
        %v352 = vcombine.low %v223, %v286
        %v354 = vunpack.c.l.s4 1983009808
        %v355 = vunpack.c.0.s8 %v354
        %v356 = vlaneseq
        %v357 = vshrl.u32 %v356, 7
        %v358 = vsub.s32 %v355, %v357
        %v359 = vrot.slane %v352, %v358
        %v360 = vcombine.low %v283, %v289
        %v362 = vunpack.c.l.s4 1983009808
        %v363 = vunpack.c.0.s8 %v362
        %v364 = vlaneseq
        %v365 = vshrl.u32 %v364, 7
        %v366 = vsub.s32 %v363, %v365
        %v367 = vrot.slane %v360, %v366
        %v368 = vcombine.low %v292, %v298
        %v370 = vunpack.c.l.s4 1983009808
        %v371 = vunpack.c.0.s8 %v370
        %v372 = vlaneseq
        %v373 = vshrl.u32 %v372, 7
        %v374 = vsub.s32 %v371, %v373
        %v375 = vrot.slane %v368, %v374
        %v376 = vcombine.low %v295, %v301
        %v378 = vunpack.c.l.s4 1983009808
        %v379 = vunpack.c.0.s8 %v378
        %v380 = vlaneseq
        %v381 = vshrl.u32 %v380, 7
        %v382 = vsub.s32 %v379, %v381
        %v383 = vrot.slane %v376, %v382
        %v384 = vcombine.low %v359, %v367
        %v386 = vunpack.c.l.s4 1934713408
        %v387 = vunpack.c.0.s8 %v386
        %v388 = vlaneseq
        %v389 = vshrl.u32 %v388, 7
        %v390 = vsub.s32 %v387, %v389
        %v391 = vrot.slane %v384, %v390
        %v392 = vcombine.low %v375, %v383
        %v394 = vunpack.c.l.s4 1934713408
        %v395 = vunpack.c.0.s8 %v394
        %v396 = vlaneseq
        %v397 = vshrl.u32 %v396, 7
        %v398 = vsub.s32 %v395, %v397
        %v399 = vrot.slane %v392, %v398
        %v400 = vcombine.low %v391, %v399
        %403 = vrot.lane.b32.xlu0 %v351, 3
        %v404 = vpop.permute.xlu0 %403
        %405 = vrot.lane.b32.xlu0 %v400, 3
        %v406 = vpop.permute.xlu0 %405
        %vm409 = vcmask 154648
        %410 = vst.msk [vmem:[#allocation2 + $0x3] sm:$0xff] %vm409, %v404
        %411 = vst.msk [vmem:[#allocation2 + $0xb] sm:$0xff] %vm409, %v406
        %413 = vrot.lane.b32.xlu0 %v230, 112
        %v414 = vpop.permute.xlu0 %413
        %416 = vrot.lane.b32.xlu0 %v230, 96
        %v417 = vpop.permute.xlu0 %416
        %419 = vrot.lane.b32.xlu0 %v230, 80
        %v420 = vpop.permute.xlu0 %419
        %422 = vrot.lane.b32.xlu0 %v230, 64
        %v423 = vpop.permute.xlu0 %422
        %425 = vrot.lane.b32.xlu0 %v230, 48
        %v426 = vpop.permute.xlu0 %425
        %428 = vrot.lane.b32.xlu0 %v230, 32
        %v429 = vpop.permute.xlu0 %428
        %431 = vrot.lane.b32.xlu0 %v230, 16
        %v432 = vpop.permute.xlu0 %431
        %435 = vrot.lane.b32.xlu0 %v237, 112
        %v436 = vpop.permute.xlu0 %435
        %438 = vrot.lane.b32.xlu0 %v237, 96
        %v439 = vpop.permute.xlu0 %438
        %441 = vrot.lane.b32.xlu0 %v237, 80
        %v442 = vpop.permute.xlu0 %441
        %444 = vrot.lane.b32.xlu0 %v237, 64
        %v445 = vpop.permute.xlu0 %444
        %447 = vrot.lane.b32.xlu0 %v237, 48
        %v448 = vpop.permute.xlu0 %447
        %450 = vrot.lane.b32.xlu0 %v237, 32
        %v451 = vpop.permute.xlu0 %450
        %453 = vrot.lane.b32.xlu0 %v237, 16
        %v454 = vpop.permute.xlu0 %453
        %v456 = vcombine.low %v230, %v417
        %v458 = vunpack.c.l.s4 1983009808
        %v459 = vunpack.c.0.s8 %v458
        %v460 = vlaneseq
        %v461 = vshrl.u32 %v460, 7
        %v462 = vsub.s32 %v459, %v461
        %v463 = vrot.slane %v456, %v462
        %v464 = vcombine.low %v414, %v420
        %v466 = vunpack.c.l.s4 1983009808
        %v467 = vunpack.c.0.s8 %v466
        %v468 = vlaneseq
        %v469 = vshrl.u32 %v468, 7
        %v470 = vsub.s32 %v467, %v469
        %v471 = vrot.slane %v464, %v470
        %v472 = vcombine.low %v423, %v429
        %v474 = vunpack.c.l.s4 1983009808
        %v475 = vunpack.c.0.s8 %v474
        %v476 = vlaneseq
        %v477 = vshrl.u32 %v476, 7
        %v478 = vsub.s32 %v475, %v477
        %v479 = vrot.slane %v472, %v478
        %v480 = vcombine.low %v426, %v432
        %v482 = vunpack.c.l.s4 1983009808
        %v483 = vunpack.c.0.s8 %v482
        %v484 = vlaneseq
        %v485 = vshrl.u32 %v484, 7
        %v486 = vsub.s32 %v483, %v485
        %v487 = vrot.slane %v480, %v486
        %v488 = vcombine.low %v463, %v471
        %v490 = vunpack.c.l.s4 1934713408
        %v491 = vunpack.c.0.s8 %v490
        %v492 = vlaneseq
        %v493 = vshrl.u32 %v492, 7
        %v494 = vsub.s32 %v491, %v493
        %v495 = vrot.slane %v488, %v494
        %v496 = vcombine.low %v479, %v487
        %v498 = vunpack.c.l.s4 1934713408
        %v499 = vunpack.c.0.s8 %v498
        %v500 = vlaneseq
        %v501 = vshrl.u32 %v500, 7
        %v502 = vsub.s32 %v499, %v501
        %v503 = vrot.slane %v496, %v502
        %v504 = vcombine.low %v495, %v503
        %v505 = vcombine.low %v237, %v439
        %v507 = vunpack.c.l.s4 1983009808
        %v508 = vunpack.c.0.s8 %v507
        %v509 = vlaneseq
        %v510 = vshrl.u32 %v509, 7
        %v511 = vsub.s32 %v508, %v510
        %v512 = vrot.slane %v505, %v511
        %v513 = vcombine.low %v436, %v442
        %v515 = vunpack.c.l.s4 1983009808
        %v516 = vunpack.c.0.s8 %v515
        %v517 = vlaneseq
        %v518 = vshrl.u32 %v517, 7
        %v519 = vsub.s32 %v516, %v518
        %v520 = vrot.slane %v513, %v519
        %v521 = vcombine.low %v445, %v451
        %v523 = vunpack.c.l.s4 1983009808
        %v524 = vunpack.c.0.s8 %v523
        %v525 = vlaneseq
        %v526 = vshrl.u32 %v525, 7
        %v527 = vsub.s32 %v524, %v526
        %v528 = vrot.slane %v521, %v527
        %v529 = vcombine.low %v448, %v454
        %v531 = vunpack.c.l.s4 1983009808
        %v532 = vunpack.c.0.s8 %v531
        %v533 = vlaneseq
        %v534 = vshrl.u32 %v533, 7
        %v535 = vsub.s32 %v532, %v534
        %v536 = vrot.slane %v529, %v535
        %v537 = vcombine.low %v512, %v520
        %v539 = vunpack.c.l.s4 1934713408
        %v540 = vunpack.c.0.s8 %v539
        %v541 = vlaneseq
        %v542 = vshrl.u32 %v541, 7
        %v543 = vsub.s32 %v540, %v542
        %v544 = vrot.slane %v537, %v543
        %v545 = vcombine.low %v528, %v536
        %v547 = vunpack.c.l.s4 1934713408
        %v548 = vunpack.c.0.s8 %v547
        %v549 = vlaneseq
        %v550 = vshrl.u32 %v549, 7
        %v551 = vsub.s32 %v548, %v550
        %v552 = vrot.slane %v545, %v551
        %v553 = vcombine.low %v544, %v552
        %556 = vrot.lane.b32.xlu0 %v504, 3
        %v557 = vpop.permute.xlu0 %556
        %558 = vrot.lane.b32.xlu0 %v553, 3
        %v559 = vpop.permute.xlu0 %558
        %s562 = scalar_lea.vmem [#allocation2], 24
        %563 = vst.msk [vmem:[%s562 + $0x3] sm:$0xff] %vm409, %v557
        %564 = vst.msk [vmem:[%s562 + $0xb] sm:$0xff] %vm409, %v559
        %v565 = vld [vmem:[#allocation2] sm:$0xff]
        %v566 = vld [vmem:[#allocation2 + $0x8] sm:$0xff]
        %v567 = vld [vmem:[#allocation2 + $0x10] sm:$0x3f]
        %v568 = vld [vmem:[%s562] sm:$0xff]
        %v569 = vld [vmem:[%s562 + $0x8] sm:$0xff]
        %v570 = vld [vmem:[%s562 + $0x10] sm:$0x3f]
        %s571 = sld [smem:[#allocation4]]
        %s572 = sld [smem:[#allocation4 + $0x31]]
        %v573 = vstv %s571
        %v574 = vmul.f32 %v573, %v565
        %v575 = vmul.f32 %v573, %v566
        %v576 = vadd.f32 %v574, 0.0
        %v577 = vadd.f32 %v575, 0.0
        %v578 = vstv %s572
        %v579 = vmul.f32 %v578, %v568
        %v580 = vmul.f32 %v578, %v569
        %v581 = vadd.f32 %v576, %v579
        %v582 = vadd.f32 %v577, %v580
        %s583 = sld [smem:[#allocation4 + $0x7]]
        %s584 = sld [smem:[#allocation4 + $0x38]]
        %v585 = vstv %s583
        %v586 = vmul.f32 %v585, %v565
        %v587 = vmul.f32 %v585, %v566
        %v588 = vmul.f32 %v585, %v567
        %vm592 = vcmask 1046528
        %v593 = vrot.slane %v586, 1
        %v594 = vrot.slane %v587, 1
        %v595 = vsel %vm592, %v593, %v594
        %v596 = vrot.slane %v588, 1
        %v597 = vsel %vm592, %v594, %v596
        %v600 = vadd.f32 %v581, %v595
        %v601 = vadd.f32 %v582, %v597
        %v602 = vstv %s584
        %v603 = vmul.f32 %v602, %v568
        %v604 = vmul.f32 %v602, %v569
        %v605 = vmul.f32 %v602, %v570
        %v609 = vrot.slane %v603, 1
        %v610 = vrot.slane %v604, 1
        %v611 = vsel %vm592, %v609, %v610
        %v612 = vrot.slane %v605, 1
        %v613 = vsel %vm592, %v610, %v612
        %v616 = vadd.f32 %v600, %v611
        %v617 = vadd.f32 %v601, %v613
        %s618 = sld [smem:[#allocation4 + $0xe]]
        %s619 = sld [smem:[#allocation4 + $0x3f]]
        %v620 = vstv %s618
        %v621 = vmul.f32 %v620, %v565
        %v622 = vmul.f32 %v620, %v566
        %v623 = vmul.f32 %v620, %v567
        %vm627 = vcmask 1045504
        %v628 = vrot.slane %v621, 2
        %v629 = vrot.slane %v622, 2
        %v630 = vsel %vm627, %v628, %v629
        %v631 = vrot.slane %v623, 2
        %v632 = vsel %vm627, %v629, %v631
        %v635 = vadd.f32 %v616, %v630
        %v636 = vadd.f32 %v617, %v632
        %v637 = vstv %s619
        %v638 = vmul.f32 %v637, %v568
        %v639 = vmul.f32 %v637, %v569
        %v640 = vmul.f32 %v637, %v570
        %v644 = vrot.slane %v638, 2
        %v645 = vrot.slane %v639, 2
        %v646 = vsel %vm627, %v644, %v645
        %v647 = vrot.slane %v640, 2
        %v648 = vsel %vm627, %v645, %v647
        %v651 = vadd.f32 %v635, %v646
        %v652 = vadd.f32 %v636, %v648
        %s653 = sld [smem:[#allocation4 + $0x15]]
        %s654 = sld [smem:[#allocation4 + $0x46]]
        %v655 = vstv %s653
        %v656 = vmul.f32 %v655, %v565
        %v657 = vmul.f32 %v655, %v566
        %v658 = vmul.f32 %v655, %v567
        %vm662 = vcmask 1044480
        %v663 = vrot.slane %v656, 3
        %v664 = vrot.slane %v657, 3
        %v665 = vsel %vm662, %v663, %v664
        %v666 = vrot.slane %v658, 3
        %v667 = vsel %vm662, %v664, %v666
        %v670 = vadd.f32 %v651, %v665
        %v671 = vadd.f32 %v652, %v667
        %v672 = vstv %s654
        %v673 = vmul.f32 %v672, %v568
        %v674 = vmul.f32 %v672, %v569
        %v675 = vmul.f32 %v672, %v570
        %v679 = vrot.slane %v673, 3
        %v680 = vrot.slane %v674, 3
        %v681 = vsel %vm662, %v679, %v680
        %v682 = vrot.slane %v675, 3
        %v683 = vsel %vm662, %v680, %v682
        %v686 = vadd.f32 %v670, %v681
        %v687 = vadd.f32 %v671, %v683
        %s688 = sld [smem:[#allocation4 + $0x1c]]
        %s689 = sld [smem:[#allocation4 + $0x4d]]
        %v690 = vstv %s688
        %v691 = vmul.f32 %v690, %v565
        %v692 = vmul.f32 %v690, %v566
        %v693 = vmul.f32 %v690, %v567
        %v697 = vrot.slane %v691, 4
        %v698 = vrot.slane %v692, 4
        %v699 = vsel %vm206, %v697, %v698
        %v700 = vrot.slane %v693, 4
        %v701 = vsel %vm206, %v698, %v700
        %v704 = vadd.f32 %v686, %v699
        %v705 = vadd.f32 %v687, %v701
        %v706 = vstv %s689
        %v707 = vmul.f32 %v706, %v568
        %v708 = vmul.f32 %v706, %v569
        %v709 = vmul.f32 %v706, %v570
        %v713 = vrot.slane %v707, 4
        %v714 = vrot.slane %v708, 4
        %v715 = vsel %vm206, %v713, %v714
        %v716 = vrot.slane %v709, 4
        %v717 = vsel %vm206, %v714, %v716
        %v720 = vadd.f32 %v704, %v715
        %v721 = vadd.f32 %v705, %v717
        %s722 = sld [smem:[#allocation4 + $0x23]]
        %s723 = sld [smem:[#allocation4 + $0x54]]
        %v724 = vstv %s722
        %v725 = vmul.f32 %v724, %v565
        %v726 = vmul.f32 %v724, %v566
        %v727 = vmul.f32 %v724, %v567
        %vm731 = vcmask 1042432
        %v732 = vrot.slane %v725, 5
        %v733 = vrot.slane %v726, 5
        %v734 = vsel %vm731, %v732, %v733
        %v735 = vrot.slane %v727, 5
        %v736 = vsel %vm731, %v733, %v735
        %v739 = vadd.f32 %v720, %v734
        %v740 = vadd.f32 %v721, %v736
        %v741 = vstv %s723
        %v742 = vmul.f32 %v741, %v568
        %v743 = vmul.f32 %v741, %v569
        %v744 = vmul.f32 %v741, %v570
        %v748 = vrot.slane %v742, 5
        %v749 = vrot.slane %v743, 5
        %v750 = vsel %vm731, %v748, %v749
        %v751 = vrot.slane %v744, 5
        %v752 = vsel %vm731, %v749, %v751
        %v755 = vadd.f32 %v739, %v750
        %v756 = vadd.f32 %v740, %v752
        %s757 = sld [smem:[#allocation4 + $0x2a]]
        %s758 = sld [smem:[#allocation4 + $0x5b]]
        %v759 = vstv %s757
        %v760 = vmul.f32 %v759, %v565
        %v761 = vmul.f32 %v759, %v566
        %v762 = vmul.f32 %v759, %v567
        %vm766 = vcmask 1041408
        %v767 = vrot.slane %v760, 6
        %v768 = vrot.slane %v761, 6
        %v769 = vsel %vm766, %v767, %v768
        %v770 = vrot.slane %v762, 6
        %v771 = vsel %vm766, %v768, %v770
        %v774 = vadd.f32 %v755, %v769
        %v775 = vadd.f32 %v756, %v771
        %v776 = vstv %s758
        %v777 = vmul.f32 %v776, %v568
        %v778 = vmul.f32 %v776, %v569
        %v779 = vmul.f32 %v776, %v570
        %v783 = vrot.slane %v777, 6
        %v784 = vrot.slane %v778, 6
        %v785 = vsel %vm766, %v783, %v784
        %v786 = vrot.slane %v779, 6
        %v787 = vsel %vm766, %v784, %v786
        %v790 = vadd.f32 %v774, %v785
        %v791 = vadd.f32 %v775, %v787
        %s792 = sld [smem:[#allocation4 + $0x1]]
        %s793 = sld [smem:[#allocation4 + $0x32]]
        %v794 = vstv %s792
        %v795 = vmul.f32 %v794, %v565
        %v796 = vmul.f32 %v794, %v566
        %v797 = vadd.f32 %v795, 0.0
        %v798 = vadd.f32 %v796, 0.0
        %v799 = vstv %s793
        %v800 = vmul.f32 %v799, %v568
        %v801 = vmul.f32 %v799, %v569
        %v802 = vadd.f32 %v797, %v800
        %v803 = vadd.f32 %v798, %v801
        %s804 = sld [smem:[#allocation4 + $0x8]]
        %s805 = sld [smem:[#allocation4 + $0x39]]
        %v806 = vstv %s804
        %v807 = vmul.f32 %v806, %v565
        %v808 = vmul.f32 %v806, %v566
        %v809 = vmul.f32 %v806, %v567
        %v813 = vrot.slane %v807, 1
        %v814 = vrot.slane %v808, 1
        %v815 = vsel %vm592, %v813, %v814
        %v816 = vrot.slane %v809, 1
        %v817 = vsel %vm592, %v814, %v816
        %v820 = vadd.f32 %v802, %v815
        %v821 = vadd.f32 %v803, %v817
        %v822 = vstv %s805
        %v823 = vmul.f32 %v822, %v568
        %v824 = vmul.f32 %v822, %v569
        %v825 = vmul.f32 %v822, %v570
        %v829 = vrot.slane %v823, 1
        %v830 = vrot.slane %v824, 1
        %v831 = vsel %vm592, %v829, %v830
        %v832 = vrot.slane %v825, 1
        %v833 = vsel %vm592, %v830, %v832
        %v836 = vadd.f32 %v820, %v831
        %v837 = vadd.f32 %v821, %v833
        %s838 = sld [smem:[#allocation4 + $0xf]]
        %s839 = sld [smem:[#allocation4 + $0x40]]
        %v840 = vstv %s838
        %v841 = vmul.f32 %v840, %v565
        %v842 = vmul.f32 %v840, %v566
        %v843 = vmul.f32 %v840, %v567
        %v847 = vrot.slane %v841, 2
        %v848 = vrot.slane %v842, 2
        %v849 = vsel %vm627, %v847, %v848
        %v850 = vrot.slane %v843, 2
        %v851 = vsel %vm627, %v848, %v850
        %v854 = vadd.f32 %v836, %v849
        %v855 = vadd.f32 %v837, %v851
        %v856 = vstv %s839
        %v857 = vmul.f32 %v856, %v568
        %v858 = vmul.f32 %v856, %v569
        %v859 = vmul.f32 %v856, %v570
        %v863 = vrot.slane %v857, 2
        %v864 = vrot.slane %v858, 2
        %v865 = vsel %vm627, %v863, %v864
        %v866 = vrot.slane %v859, 2
        %v867 = vsel %vm627, %v864, %v866
        %v870 = vadd.f32 %v854, %v865
        %v871 = vadd.f32 %v855, %v867
        %s872 = sld [smem:[#allocation4 + $0x16]]
        %s873 = sld [smem:[#allocation4 + $0x47]]
        %v874 = vstv %s872
        %v875 = vmul.f32 %v874, %v565
        %v876 = vmul.f32 %v874, %v566
        %v877 = vmul.f32 %v874, %v567
        %v881 = vrot.slane %v875, 3
        %v882 = vrot.slane %v876, 3
        %v883 = vsel %vm662, %v881, %v882
        %v884 = vrot.slane %v877, 3
        %v885 = vsel %vm662, %v882, %v884
        %v888 = vadd.f32 %v870, %v883
        %v889 = vadd.f32 %v871, %v885
        %v890 = vstv %s873
        %v891 = vmul.f32 %v890, %v568
        %v892 = vmul.f32 %v890, %v569
        %v893 = vmul.f32 %v890, %v570
        %v897 = vrot.slane %v891, 3
        %v898 = vrot.slane %v892, 3
        %v899 = vsel %vm662, %v897, %v898
        %v900 = vrot.slane %v893, 3
        %v901 = vsel %vm662, %v898, %v900
        %v904 = vadd.f32 %v888, %v899
        %v905 = vadd.f32 %v889, %v901
        %s906 = sld [smem:[#allocation4 + $0x1d]]
        %s907 = sld [smem:[#allocation4 + $0x4e]]
        %v908 = vstv %s906
        %v909 = vmul.f32 %v908, %v565
        %v910 = vmul.f32 %v908, %v566
        %v911 = vmul.f32 %v908, %v567
        %v915 = vrot.slane %v909, 4
        %v916 = vrot.slane %v910, 4
        %v917 = vsel %vm206, %v915, %v916
        %v918 = vrot.slane %v911, 4
        %v919 = vsel %vm206, %v916, %v918
        %v922 = vadd.f32 %v904, %v917
        %v923 = vadd.f32 %v905, %v919
        %v924 = vstv %s907
        %v925 = vmul.f32 %v924, %v568
        %v926 = vmul.f32 %v924, %v569
        %v927 = vmul.f32 %v924, %v570
        %v931 = vrot.slane %v925, 4
        %v932 = vrot.slane %v926, 4
        %v933 = vsel %vm206, %v931, %v932
        %v934 = vrot.slane %v927, 4
        %v935 = vsel %vm206, %v932, %v934
        %v938 = vadd.f32 %v922, %v933
        %v939 = vadd.f32 %v923, %v935
        %s940 = sld [smem:[#allocation4 + $0x24]]
        %s941 = sld [smem:[#allocation4 + $0x55]]
        %v942 = vstv %s940
        %v943 = vmul.f32 %v942, %v565
        %v944 = vmul.f32 %v942, %v566
        %v945 = vmul.f32 %v942, %v567
        %v949 = vrot.slane %v943, 5
        %v950 = vrot.slane %v944, 5
        %v951 = vsel %vm731, %v949, %v950
        %v952 = vrot.slane %v945, 5
        %v953 = vsel %vm731, %v950, %v952
        %v956 = vadd.f32 %v938, %v951
        %v957 = vadd.f32 %v939, %v953
        %v958 = vstv %s941
        %v959 = vmul.f32 %v958, %v568
        %v960 = vmul.f32 %v958, %v569
        %v961 = vmul.f32 %v958, %v570
        %v965 = vrot.slane %v959, 5
        %v966 = vrot.slane %v960, 5
        %v967 = vsel %vm731, %v965, %v966
        %v968 = vrot.slane %v961, 5
        %v969 = vsel %vm731, %v966, %v968
        %v972 = vadd.f32 %v956, %v967
        %v973 = vadd.f32 %v957, %v969
        %s974 = sld [smem:[#allocation4 + $0x2b]]
        %s975 = sld [smem:[#allocation4 + $0x5c]]
        %v976 = vstv %s974
        %v977 = vmul.f32 %v976, %v565
        %v978 = vmul.f32 %v976, %v566
        %v979 = vmul.f32 %v976, %v567
        %v983 = vrot.slane %v977, 6
        %v984 = vrot.slane %v978, 6
        %v985 = vsel %vm766, %v983, %v984
        %v986 = vrot.slane %v979, 6
        %v987 = vsel %vm766, %v984, %v986
        %v990 = vadd.f32 %v972, %v985
        %v991 = vadd.f32 %v973, %v987
        %v992 = vstv %s975
        %v993 = vmul.f32 %v992, %v568
        %v994 = vmul.f32 %v992, %v569
        %v995 = vmul.f32 %v992, %v570
        %v999 = vrot.slane %v993, 6
        %v1000 = vrot.slane %v994, 6
        %v1001 = vsel %vm766, %v999, %v1000
        %v1002 = vrot.slane %v995, 6
        %v1003 = vsel %vm766, %v1000, %v1002
        %v1006 = vadd.f32 %v990, %v1001
        %v1007 = vadd.f32 %v991, %v1003
        %s1008 = sld [smem:[#allocation4 + $0x2]]
        %s1009 = sld [smem:[#allocation4 + $0x33]]
        %v1010 = vstv %s1008
        %v1011 = vmul.f32 %v1010, %v565
        %v1012 = vmul.f32 %v1010, %v566
        %v1013 = vadd.f32 %v1011, 0.0
        %v1014 = vadd.f32 %v1012, 0.0
        %v1015 = vstv %s1009
        %v1016 = vmul.f32 %v1015, %v568
        %v1017 = vmul.f32 %v1015, %v569
        %v1018 = vadd.f32 %v1013, %v1016
        %v1019 = vadd.f32 %v1014, %v1017
        %s1020 = sld [smem:[#allocation4 + $0x9]]
        %s1021 = sld [smem:[#allocation4 + $0x3a]]
        %v1022 = vstv %s1020
        %v1023 = vmul.f32 %v1022, %v565
        %v1024 = vmul.f32 %v1022, %v566
        %v1025 = vmul.f32 %v1022, %v567
        %v1029 = vrot.slane %v1023, 1
        %v1030 = vrot.slane %v1024, 1
        %v1031 = vsel %vm592, %v1029, %v1030
        %v1032 = vrot.slane %v1025, 1
        %v1033 = vsel %vm592, %v1030, %v1032
        %v1036 = vadd.f32 %v1018, %v1031
        %v1037 = vadd.f32 %v1019, %v1033
        %v1038 = vstv %s1021
        %v1039 = vmul.f32 %v1038, %v568
        %v1040 = vmul.f32 %v1038, %v569
        %v1041 = vmul.f32 %v1038, %v570
        %v1045 = vrot.slane %v1039, 1
        %v1046 = vrot.slane %v1040, 1
        %v1047 = vsel %vm592, %v1045, %v1046
        %v1048 = vrot.slane %v1041, 1
        %v1049 = vsel %vm592, %v1046, %v1048
        %v1052 = vadd.f32 %v1036, %v1047
        %v1053 = vadd.f32 %v1037, %v1049
        %s1054 = sld [smem:[#allocation4 + $0x10]]
        %s1055 = sld [smem:[#allocation4 + $0x41]]
        %v1056 = vstv %s1054
        %v1057 = vmul.f32 %v1056, %v565
        %v1058 = vmul.f32 %v1056, %v566
        %v1059 = vmul.f32 %v1056, %v567
        %v1063 = vrot.slane %v1057, 2
        %v1064 = vrot.slane %v1058, 2
        %v1065 = vsel %vm627, %v1063, %v1064
        %v1066 = vrot.slane %v1059, 2
        %v1067 = vsel %vm627, %v1064, %v1066
        %v1070 = vadd.f32 %v1052, %v1065
        %v1071 = vadd.f32 %v1053, %v1067
        %v1072 = vstv %s1055
        %v1073 = vmul.f32 %v1072, %v568
        %v1074 = vmul.f32 %v1072, %v569
        %v1075 = vmul.f32 %v1072, %v570
        %v1079 = vrot.slane %v1073, 2
        %v1080 = vrot.slane %v1074, 2
        %v1081 = vsel %vm627, %v1079, %v1080
        %v1082 = vrot.slane %v1075, 2
        %v1083 = vsel %vm627, %v1080, %v1082
        %v1086 = vadd.f32 %v1070, %v1081
        %v1087 = vadd.f32 %v1071, %v1083
        %s1088 = sld [smem:[#allocation4 + $0x17]]
        %s1089 = sld [smem:[#allocation4 + $0x48]]
        %v1090 = vstv %s1088
        %v1091 = vmul.f32 %v1090, %v565
        %v1092 = vmul.f32 %v1090, %v566
        %v1093 = vmul.f32 %v1090, %v567
        %v1097 = vrot.slane %v1091, 3
        %v1098 = vrot.slane %v1092, 3
        %v1099 = vsel %vm662, %v1097, %v1098
        %v1100 = vrot.slane %v1093, 3
        %v1101 = vsel %vm662, %v1098, %v1100
        %v1104 = vadd.f32 %v1086, %v1099
        %v1105 = vadd.f32 %v1087, %v1101
        %v1106 = vstv %s1089
        %v1107 = vmul.f32 %v1106, %v568
        %v1108 = vmul.f32 %v1106, %v569
        %v1109 = vmul.f32 %v1106, %v570
        %v1113 = vrot.slane %v1107, 3
        %v1114 = vrot.slane %v1108, 3
        %v1115 = vsel %vm662, %v1113, %v1114
        %v1116 = vrot.slane %v1109, 3
        %v1117 = vsel %vm662, %v1114, %v1116
        %v1120 = vadd.f32 %v1104, %v1115
        %v1121 = vadd.f32 %v1105, %v1117
        %s1122 = sld [smem:[#allocation4 + $0x1e]]
        %s1123 = sld [smem:[#allocation4 + $0x4f]]
        %v1124 = vstv %s1122
        %v1125 = vmul.f32 %v1124, %v565
        %v1126 = vmul.f32 %v1124, %v566
        %v1127 = vmul.f32 %v1124, %v567
        %v1131 = vrot.slane %v1125, 4
        %v1132 = vrot.slane %v1126, 4
        %v1133 = vsel %vm206, %v1131, %v1132
        %v1134 = vrot.slane %v1127, 4
        %v1135 = vsel %vm206, %v1132, %v1134
        %v1138 = vadd.f32 %v1120, %v1133
        %v1139 = vadd.f32 %v1121, %v1135
        %v1140 = vstv %s1123
        %v1141 = vmul.f32 %v1140, %v568
        %v1142 = vmul.f32 %v1140, %v569
        %v1143 = vmul.f32 %v1140, %v570
        %v1147 = vrot.slane %v1141, 4
        %v1148 = vrot.slane %v1142, 4
        %v1149 = vsel %vm206, %v1147, %v1148
        %v1150 = vrot.slane %v1143, 4
        %v1151 = vsel %vm206, %v1148, %v1150
        %v1154 = vadd.f32 %v1138, %v1149
        %v1155 = vadd.f32 %v1139, %v1151
        %s1156 = sld [smem:[#allocation4 + $0x25]]
        %s1157 = sld [smem:[#allocation4 + $0x56]]
        %v1158 = vstv %s1156
        %v1159 = vmul.f32 %v1158, %v565
        %v1160 = vmul.f32 %v1158, %v566
        %v1161 = vmul.f32 %v1158, %v567
        %v1165 = vrot.slane %v1159, 5
        %v1166 = vrot.slane %v1160, 5
        %v1167 = vsel %vm731, %v1165, %v1166
        %v1168 = vrot.slane %v1161, 5
        %v1169 = vsel %vm731, %v1166, %v1168
        %v1172 = vadd.f32 %v1154, %v1167
        %v1173 = vadd.f32 %v1155, %v1169
        %v1174 = vstv %s1157
        %v1175 = vmul.f32 %v1174, %v568
        %v1176 = vmul.f32 %v1174, %v569
        %v1177 = vmul.f32 %v1174, %v570
        %v1181 = vrot.slane %v1175, 5
        %v1182 = vrot.slane %v1176, 5
        %v1183 = vsel %vm731, %v1181, %v1182
        %v1184 = vrot.slane %v1177, 5
        %v1185 = vsel %vm731, %v1182, %v1184
        %v1188 = vadd.f32 %v1172, %v1183
        %v1189 = vadd.f32 %v1173, %v1185
        %s1190 = sld [smem:[#allocation4 + $0x2c]]
        %s1191 = sld [smem:[#allocation4 + $0x5d]]
        %v1192 = vstv %s1190
        %v1193 = vmul.f32 %v1192, %v565
        %v1194 = vmul.f32 %v1192, %v566
        %v1195 = vmul.f32 %v1192, %v567
        %v1199 = vrot.slane %v1193, 6
        %v1200 = vrot.slane %v1194, 6
        %v1201 = vsel %vm766, %v1199, %v1200
        %v1202 = vrot.slane %v1195, 6
        %v1203 = vsel %vm766, %v1200, %v1202
        %v1206 = vadd.f32 %v1188, %v1201
        %v1207 = vadd.f32 %v1189, %v1203
        %v1208 = vstv %s1191
        %v1209 = vmul.f32 %v1208, %v568
        %v1210 = vmul.f32 %v1208, %v569
        %v1211 = vmul.f32 %v1208, %v570
        %v1215 = vrot.slane %v1209, 6
        %v1216 = vrot.slane %v1210, 6
        %v1217 = vsel %vm766, %v1215, %v1216
        %v1218 = vrot.slane %v1211, 6
        %v1219 = vsel %vm766, %v1216, %v1218
        %v1222 = vadd.f32 %v1206, %v1217
        %v1223 = vadd.f32 %v1207, %v1219
        %s1224 = sld [smem:[#allocation4 + $0x3]]
        %s1225 = sld [smem:[#allocation4 + $0x34]]
        %v1226 = vstv %s1224
        %v1227 = vmul.f32 %v1226, %v565
        %v1228 = vmul.f32 %v1226, %v566
        %v1229 = vadd.f32 %v1227, 0.0
        %v1230 = vadd.f32 %v1228, 0.0
        %v1231 = vstv %s1225
        %v1232 = vmul.f32 %v1231, %v568
        %v1233 = vmul.f32 %v1231, %v569
        %v1234 = vadd.f32 %v1229, %v1232
        %v1235 = vadd.f32 %v1230, %v1233
        %s1236 = sld [smem:[#allocation4 + $0xa]]
        %s1237 = sld [smem:[#allocation4 + $0x3b]]
        %v1238 = vstv %s1236
        %v1239 = vmul.f32 %v1238, %v565
        %v1240 = vmul.f32 %v1238, %v566
        %v1241 = vmul.f32 %v1238, %v567
        %v1245 = vrot.slane %v1239, 1
        %v1246 = vrot.slane %v1240, 1
        %v1247 = vsel %vm592, %v1245, %v1246
        %v1248 = vrot.slane %v1241, 1
        %v1249 = vsel %vm592, %v1246, %v1248
        %v1252 = vadd.f32 %v1234, %v1247
        %v1253 = vadd.f32 %v1235, %v1249
        %v1254 = vstv %s1237
        %v1255 = vmul.f32 %v1254, %v568
        %v1256 = vmul.f32 %v1254, %v569
        %v1257 = vmul.f32 %v1254, %v570
        %v1261 = vrot.slane %v1255, 1
        %v1262 = vrot.slane %v1256, 1
        %v1263 = vsel %vm592, %v1261, %v1262
        %v1264 = vrot.slane %v1257, 1
        %v1265 = vsel %vm592, %v1262, %v1264
        %v1268 = vadd.f32 %v1252, %v1263
        %v1269 = vadd.f32 %v1253, %v1265
        %s1270 = sld [smem:[#allocation4 + $0x11]]
        %s1271 = sld [smem:[#allocation4 + $0x42]]
        %v1272 = vstv %s1270
        %v1273 = vmul.f32 %v1272, %v565
        %v1274 = vmul.f32 %v1272, %v566
        %v1275 = vmul.f32 %v1272, %v567
        %v1279 = vrot.slane %v1273, 2
        %v1280 = vrot.slane %v1274, 2
        %v1281 = vsel %vm627, %v1279, %v1280
        %v1282 = vrot.slane %v1275, 2
        %v1283 = vsel %vm627, %v1280, %v1282
        %v1286 = vadd.f32 %v1268, %v1281
        %v1287 = vadd.f32 %v1269, %v1283
        %v1288 = vstv %s1271
        %v1289 = vmul.f32 %v1288, %v568
        %v1290 = vmul.f32 %v1288, %v569
        %v1291 = vmul.f32 %v1288, %v570
        %v1295 = vrot.slane %v1289, 2
        %v1296 = vrot.slane %v1290, 2
        %v1297 = vsel %vm627, %v1295, %v1296
        %v1298 = vrot.slane %v1291, 2
        %v1299 = vsel %vm627, %v1296, %v1298
        %v1302 = vadd.f32 %v1286, %v1297
        %v1303 = vadd.f32 %v1287, %v1299
        %s1304 = sld [smem:[#allocation4 + $0x18]]
        %s1305 = sld [smem:[#allocation4 + $0x49]]
        %v1306 = vstv %s1304
        %v1307 = vmul.f32 %v1306, %v565
        %v1308 = vmul.f32 %v1306, %v566
        %v1309 = vmul.f32 %v1306, %v567
        %v1313 = vrot.slane %v1307, 3
        %v1314 = vrot.slane %v1308, 3
        %v1315 = vsel %vm662, %v1313, %v1314
        %v1316 = vrot.slane %v1309, 3
        %v1317 = vsel %vm662, %v1314, %v1316
        %v1320 = vadd.f32 %v1302, %v1315
        %v1321 = vadd.f32 %v1303, %v1317
        %v1322 = vstv %s1305
        %v1323 = vmul.f32 %v1322, %v568
        %v1324 = vmul.f32 %v1322, %v569
        %v1325 = vmul.f32 %v1322, %v570
        %v1329 = vrot.slane %v1323, 3
        %v1330 = vrot.slane %v1324, 3
        %v1331 = vsel %vm662, %v1329, %v1330
        %v1332 = vrot.slane %v1325, 3
        %v1333 = vsel %vm662, %v1330, %v1332
        %v1336 = vadd.f32 %v1320, %v1331
        %v1337 = vadd.f32 %v1321, %v1333
        %s1338 = sld [smem:[#allocation4 + $0x1f]]
        %s1339 = sld [smem:[#allocation4 + $0x50]]
        %v1340 = vstv %s1338
        %v1341 = vmul.f32 %v1340, %v565
        %v1342 = vmul.f32 %v1340, %v566
        %v1343 = vmul.f32 %v1340, %v567
        %v1347 = vrot.slane %v1341, 4
        %v1348 = vrot.slane %v1342, 4
        %v1349 = vsel %vm206, %v1347, %v1348
        %v1350 = vrot.slane %v1343, 4
        %v1351 = vsel %vm206, %v1348, %v1350
        %v1354 = vadd.f32 %v1336, %v1349
        %v1355 = vadd.f32 %v1337, %v1351
        %v1356 = vstv %s1339
        %v1357 = vmul.f32 %v1356, %v568
        %v1358 = vmul.f32 %v1356, %v569
        %v1359 = vmul.f32 %v1356, %v570
        %v1363 = vrot.slane %v1357, 4
        %v1364 = vrot.slane %v1358, 4
        %v1365 = vsel %vm206, %v1363, %v1364
        %v1366 = vrot.slane %v1359, 4
        %v1367 = vsel %vm206, %v1364, %v1366
        %v1370 = vadd.f32 %v1354, %v1365
        %v1371 = vadd.f32 %v1355, %v1367
        %s1372 = sld [smem:[#allocation4 + $0x26]]
        %s1373 = sld [smem:[#allocation4 + $0x57]]
        %v1374 = vstv %s1372
        %v1375 = vmul.f32 %v1374, %v565
        %v1376 = vmul.f32 %v1374, %v566
        %v1377 = vmul.f32 %v1374, %v567
        %v1381 = vrot.slane %v1375, 5
        %v1382 = vrot.slane %v1376, 5
        %v1383 = vsel %vm731, %v1381, %v1382
        %v1384 = vrot.slane %v1377, 5
        %v1385 = vsel %vm731, %v1382, %v1384
        %v1388 = vadd.f32 %v1370, %v1383
        %v1389 = vadd.f32 %v1371, %v1385
        %v1390 = vstv %s1373
        %v1391 = vmul.f32 %v1390, %v568
        %v1392 = vmul.f32 %v1390, %v569
        %v1393 = vmul.f32 %v1390, %v570
        %v1397 = vrot.slane %v1391, 5
        %v1398 = vrot.slane %v1392, 5
        %v1399 = vsel %vm731, %v1397, %v1398
        %v1400 = vrot.slane %v1393, 5
        %v1401 = vsel %vm731, %v1398, %v1400
        %v1404 = vadd.f32 %v1388, %v1399
        %v1405 = vadd.f32 %v1389, %v1401
        %s1406 = sld [smem:[#allocation4 + $0x2d]]
        %s1407 = sld [smem:[#allocation4 + $0x5e]]
        %v1408 = vstv %s1406
        %v1409 = vmul.f32 %v1408, %v565
        %v1410 = vmul.f32 %v1408, %v566
        %v1411 = vmul.f32 %v1408, %v567
        %v1415 = vrot.slane %v1409, 6
        %v1416 = vrot.slane %v1410, 6
        %v1417 = vsel %vm766, %v1415, %v1416
        %v1418 = vrot.slane %v1411, 6
        %v1419 = vsel %vm766, %v1416, %v1418
        %v1422 = vadd.f32 %v1404, %v1417
        %v1423 = vadd.f32 %v1405, %v1419
        %v1424 = vstv %s1407
        %v1425 = vmul.f32 %v1424, %v568
        %v1426 = vmul.f32 %v1424, %v569
        %v1427 = vmul.f32 %v1424, %v570
        %v1431 = vrot.slane %v1425, 6
        %v1432 = vrot.slane %v1426, 6
        %v1433 = vsel %vm766, %v1431, %v1432
        %v1434 = vrot.slane %v1427, 6
        %v1435 = vsel %vm766, %v1432, %v1434
        %v1438 = vadd.f32 %v1422, %v1433
        %v1439 = vadd.f32 %v1423, %v1435
        %s1440 = sld [smem:[#allocation4 + $0x4]]
        %s1441 = sld [smem:[#allocation4 + $0x35]]
        %v1442 = vstv %s1440
        %v1443 = vmul.f32 %v1442, %v565
        %v1444 = vmul.f32 %v1442, %v566
        %v1445 = vadd.f32 %v1443, 0.0
        %v1446 = vadd.f32 %v1444, 0.0
        %v1447 = vstv %s1441
        %v1448 = vmul.f32 %v1447, %v568
        %v1449 = vmul.f32 %v1447, %v569
        %v1450 = vadd.f32 %v1445, %v1448
        %v1451 = vadd.f32 %v1446, %v1449
        %s1452 = sld [smem:[#allocation4 + $0xb]]
        %s1453 = sld [smem:[#allocation4 + $0x3c]]
        %v1454 = vstv %s1452
        %v1455 = vmul.f32 %v1454, %v565
        %v1456 = vmul.f32 %v1454, %v566
        %v1457 = vmul.f32 %v1454, %v567
        %v1461 = vrot.slane %v1455, 1
        %v1462 = vrot.slane %v1456, 1
        %v1463 = vsel %vm592, %v1461, %v1462
        %v1464 = vrot.slane %v1457, 1
        %v1465 = vsel %vm592, %v1462, %v1464
        %v1468 = vadd.f32 %v1450, %v1463
        %v1469 = vadd.f32 %v1451, %v1465
        %v1470 = vstv %s1453
        %v1471 = vmul.f32 %v1470, %v568
        %v1472 = vmul.f32 %v1470, %v569
        %v1473 = vmul.f32 %v1470, %v570
        %v1477 = vrot.slane %v1471, 1
        %v1478 = vrot.slane %v1472, 1
        %v1479 = vsel %vm592, %v1477, %v1478
        %v1480 = vrot.slane %v1473, 1
        %v1481 = vsel %vm592, %v1478, %v1480
        %v1484 = vadd.f32 %v1468, %v1479
        %v1485 = vadd.f32 %v1469, %v1481
        %s1486 = sld [smem:[#allocation4 + $0x12]]
        %s1487 = sld [smem:[#allocation4 + $0x43]]
        %v1488 = vstv %s1486
        %v1489 = vmul.f32 %v1488, %v565
        %v1490 = vmul.f32 %v1488, %v566
        %v1491 = vmul.f32 %v1488, %v567
        %v1495 = vrot.slane %v1489, 2
        %v1496 = vrot.slane %v1490, 2
        %v1497 = vsel %vm627, %v1495, %v1496
        %v1498 = vrot.slane %v1491, 2
        %v1499 = vsel %vm627, %v1496, %v1498
        %v1502 = vadd.f32 %v1484, %v1497
        %v1503 = vadd.f32 %v1485, %v1499
        %v1504 = vstv %s1487
        %v1505 = vmul.f32 %v1504, %v568
        %v1506 = vmul.f32 %v1504, %v569
        %v1507 = vmul.f32 %v1504, %v570
        %v1511 = vrot.slane %v1505, 2
        %v1512 = vrot.slane %v1506, 2
        %v1513 = vsel %vm627, %v1511, %v1512
        %v1514 = vrot.slane %v1507, 2
        %v1515 = vsel %vm627, %v1512, %v1514
        %v1518 = vadd.f32 %v1502, %v1513
        %v1519 = vadd.f32 %v1503, %v1515
        %s1520 = sld [smem:[#allocation4 + $0x19]]
        %s1521 = sld [smem:[#allocation4 + $0x4a]]
        %v1522 = vstv %s1520
        %v1523 = vmul.f32 %v1522, %v565
        %v1524 = vmul.f32 %v1522, %v566
        %v1525 = vmul.f32 %v1522, %v567
        %v1529 = vrot.slane %v1523, 3
        %v1530 = vrot.slane %v1524, 3
        %v1531 = vsel %vm662, %v1529, %v1530
        %v1532 = vrot.slane %v1525, 3
        %v1533 = vsel %vm662, %v1530, %v1532
        %v1536 = vadd.f32 %v1518, %v1531
        %v1537 = vadd.f32 %v1519, %v1533
        %v1538 = vstv %s1521
        %v1539 = vmul.f32 %v1538, %v568
        %v1540 = vmul.f32 %v1538, %v569
        %v1541 = vmul.f32 %v1538, %v570
        %v1545 = vrot.slane %v1539, 3
        %v1546 = vrot.slane %v1540, 3
        %v1547 = vsel %vm662, %v1545, %v1546
        %v1548 = vrot.slane %v1541, 3
        %v1549 = vsel %vm662, %v1546, %v1548
        %v1552 = vadd.f32 %v1536, %v1547
        %v1553 = vadd.f32 %v1537, %v1549
        %s1554 = sld [smem:[#allocation4 + $0x20]]
        %s1555 = sld [smem:[#allocation4 + $0x51]]
        %v1556 = vstv %s1554
        %v1557 = vmul.f32 %v1556, %v565
        %v1558 = vmul.f32 %v1556, %v566
        %v1559 = vmul.f32 %v1556, %v567
        %v1563 = vrot.slane %v1557, 4
        %v1564 = vrot.slane %v1558, 4
        %v1565 = vsel %vm206, %v1563, %v1564
        %v1566 = vrot.slane %v1559, 4
        %v1567 = vsel %vm206, %v1564, %v1566
        %v1570 = vadd.f32 %v1552, %v1565
        %v1571 = vadd.f32 %v1553, %v1567
        %v1572 = vstv %s1555
        %v1573 = vmul.f32 %v1572, %v568
        %v1574 = vmul.f32 %v1572, %v569
        %v1575 = vmul.f32 %v1572, %v570
        %v1579 = vrot.slane %v1573, 4
        %v1580 = vrot.slane %v1574, 4
        %v1581 = vsel %vm206, %v1579, %v1580
        %v1582 = vrot.slane %v1575, 4
        %v1583 = vsel %vm206, %v1580, %v1582
        %v1586 = vadd.f32 %v1570, %v1581
        %v1587 = vadd.f32 %v1571, %v1583
        %s1588 = sld [smem:[#allocation4 + $0x27]]
        %s1589 = sld [smem:[#allocation4 + $0x58]]
        %v1590 = vstv %s1588
        %v1591 = vmul.f32 %v1590, %v565
        %v1592 = vmul.f32 %v1590, %v566
        %v1593 = vmul.f32 %v1590, %v567
        %v1597 = vrot.slane %v1591, 5
        %v1598 = vrot.slane %v1592, 5
        %v1599 = vsel %vm731, %v1597, %v1598
        %v1600 = vrot.slane %v1593, 5
        %v1601 = vsel %vm731, %v1598, %v1600
        %v1604 = vadd.f32 %v1586, %v1599
        %v1605 = vadd.f32 %v1587, %v1601
        %v1606 = vstv %s1589
        %v1607 = vmul.f32 %v1606, %v568
        %v1608 = vmul.f32 %v1606, %v569
        %v1609 = vmul.f32 %v1606, %v570
        %v1613 = vrot.slane %v1607, 5
        %v1614 = vrot.slane %v1608, 5
        %v1615 = vsel %vm731, %v1613, %v1614
        %v1616 = vrot.slane %v1609, 5
        %v1617 = vsel %vm731, %v1614, %v1616
        %v1620 = vadd.f32 %v1604, %v1615
        %v1621 = vadd.f32 %v1605, %v1617
        %s1622 = sld [smem:[#allocation4 + $0x2e]]
        %s1623 = sld [smem:[#allocation4 + $0x5f]]
        %v1624 = vstv %s1622
        %v1625 = vmul.f32 %v1624, %v565
        %v1626 = vmul.f32 %v1624, %v566
        %v1627 = vmul.f32 %v1624, %v567
        %v1631 = vrot.slane %v1625, 6
        %v1632 = vrot.slane %v1626, 6
        %v1633 = vsel %vm766, %v1631, %v1632
        %v1634 = vrot.slane %v1627, 6
        %v1635 = vsel %vm766, %v1632, %v1634
        %v1638 = vadd.f32 %v1620, %v1633
        %v1639 = vadd.f32 %v1621, %v1635
        %v1640 = vstv %s1623
        %v1641 = vmul.f32 %v1640, %v568
        %v1642 = vmul.f32 %v1640, %v569
        %v1643 = vmul.f32 %v1640, %v570
        %v1647 = vrot.slane %v1641, 6
        %v1648 = vrot.slane %v1642, 6
        %v1649 = vsel %vm766, %v1647, %v1648
        %v1650 = vrot.slane %v1643, 6
        %v1651 = vsel %vm766, %v1648, %v1650
        %v1654 = vadd.f32 %v1638, %v1649
        %v1655 = vadd.f32 %v1639, %v1651
        %s1656 = sld [smem:[#allocation4 + $0x5]]
        %s1657 = sld [smem:[#allocation4 + $0x36]]
        %v1658 = vstv %s1656
        %v1659 = vmul.f32 %v1658, %v565
        %v1660 = vmul.f32 %v1658, %v566
        %v1661 = vadd.f32 %v1659, 0.0
        %v1662 = vadd.f32 %v1660, 0.0
        %v1663 = vstv %s1657
        %v1664 = vmul.f32 %v1663, %v568
        %v1665 = vmul.f32 %v1663, %v569
        %v1666 = vadd.f32 %v1661, %v1664
        %v1667 = vadd.f32 %v1662, %v1665
        %s1668 = sld [smem:[#allocation4 + $0xc]]
        %s1669 = sld [smem:[#allocation4 + $0x3d]]
        %v1670 = vstv %s1668
        %v1671 = vmul.f32 %v1670, %v565
        %v1672 = vmul.f32 %v1670, %v566
        %v1673 = vmul.f32 %v1670, %v567
        %v1677 = vrot.slane %v1671, 1
        %v1678 = vrot.slane %v1672, 1
        %v1679 = vsel %vm592, %v1677, %v1678
        %v1680 = vrot.slane %v1673, 1
        %v1681 = vsel %vm592, %v1678, %v1680
        %v1684 = vadd.f32 %v1666, %v1679
        %v1685 = vadd.f32 %v1667, %v1681
        %v1686 = vstv %s1669
        %v1687 = vmul.f32 %v1686, %v568
        %v1688 = vmul.f32 %v1686, %v569
        %v1689 = vmul.f32 %v1686, %v570
        %v1693 = vrot.slane %v1687, 1
        %v1694 = vrot.slane %v1688, 1
        %v1695 = vsel %vm592, %v1693, %v1694
        %v1696 = vrot.slane %v1689, 1
        %v1697 = vsel %vm592, %v1694, %v1696
        %v1700 = vadd.f32 %v1684, %v1695
        %v1701 = vadd.f32 %v1685, %v1697
        %s1702 = sld [smem:[#allocation4 + $0x13]]
        %s1703 = sld [smem:[#allocation4 + $0x44]]
        %v1704 = vstv %s1702
        %v1705 = vmul.f32 %v1704, %v565
        %v1706 = vmul.f32 %v1704, %v566
        %v1707 = vmul.f32 %v1704, %v567
        %v1711 = vrot.slane %v1705, 2
        %v1712 = vrot.slane %v1706, 2
        %v1713 = vsel %vm627, %v1711, %v1712
        %v1714 = vrot.slane %v1707, 2
        %v1715 = vsel %vm627, %v1712, %v1714
        %v1718 = vadd.f32 %v1700, %v1713
        %v1719 = vadd.f32 %v1701, %v1715
        %v1720 = vstv %s1703
        %v1721 = vmul.f32 %v1720, %v568
        %v1722 = vmul.f32 %v1720, %v569
        %v1723 = vmul.f32 %v1720, %v570
        %v1727 = vrot.slane %v1721, 2
        %v1728 = vrot.slane %v1722, 2
        %v1729 = vsel %vm627, %v1727, %v1728
        %v1730 = vrot.slane %v1723, 2
        %v1731 = vsel %vm627, %v1728, %v1730
        %v1734 = vadd.f32 %v1718, %v1729
        %v1735 = vadd.f32 %v1719, %v1731
        %s1736 = sld [smem:[#allocation4 + $0x1a]]
        %s1737 = sld [smem:[#allocation4 + $0x4b]]
        %v1738 = vstv %s1736
        %v1739 = vmul.f32 %v1738, %v565
        %v1740 = vmul.f32 %v1738, %v566
        %v1741 = vmul.f32 %v1738, %v567
        %v1745 = vrot.slane %v1739, 3
        %v1746 = vrot.slane %v1740, 3
        %v1747 = vsel %vm662, %v1745, %v1746
        %v1748 = vrot.slane %v1741, 3
        %v1749 = vsel %vm662, %v1746, %v1748
        %v1752 = vadd.f32 %v1734, %v1747
        %v1753 = vadd.f32 %v1735, %v1749
        %v1754 = vstv %s1737
        %v1755 = vmul.f32 %v1754, %v568
        %v1756 = vmul.f32 %v1754, %v569
        %v1757 = vmul.f32 %v1754, %v570
        %v1761 = vrot.slane %v1755, 3
        %v1762 = vrot.slane %v1756, 3
        %v1763 = vsel %vm662, %v1761, %v1762
        %v1764 = vrot.slane %v1757, 3
        %v1765 = vsel %vm662, %v1762, %v1764
        %v1768 = vadd.f32 %v1752, %v1763
        %v1769 = vadd.f32 %v1753, %v1765
        %s1770 = sld [smem:[#allocation4 + $0x21]]
        %s1771 = sld [smem:[#allocation4 + $0x52]]
        %v1772 = vstv %s1770
        %v1773 = vmul.f32 %v1772, %v565
        %v1774 = vmul.f32 %v1772, %v566
        %v1775 = vmul.f32 %v1772, %v567
        %v1779 = vrot.slane %v1773, 4
        %v1780 = vrot.slane %v1774, 4
        %v1781 = vsel %vm206, %v1779, %v1780
        %v1782 = vrot.slane %v1775, 4
        %v1783 = vsel %vm206, %v1780, %v1782
        %v1786 = vadd.f32 %v1768, %v1781
        %v1787 = vadd.f32 %v1769, %v1783
        %v1788 = vstv %s1771
        %v1789 = vmul.f32 %v1788, %v568
        %v1790 = vmul.f32 %v1788, %v569
        %v1791 = vmul.f32 %v1788, %v570
        %v1795 = vrot.slane %v1789, 4
        %v1796 = vrot.slane %v1790, 4
        %v1797 = vsel %vm206, %v1795, %v1796
        %v1798 = vrot.slane %v1791, 4
        %v1799 = vsel %vm206, %v1796, %v1798
        %v1802 = vadd.f32 %v1786, %v1797
        %v1803 = vadd.f32 %v1787, %v1799
        %s1804 = sld [smem:[#allocation4 + $0x28]]
        %s1805 = sld [smem:[#allocation4 + $0x59]]
        %v1806 = vstv %s1804
        %v1807 = vmul.f32 %v1806, %v565
        %v1808 = vmul.f32 %v1806, %v566
        %v1809 = vmul.f32 %v1806, %v567
        %v1813 = vrot.slane %v1807, 5
        %v1814 = vrot.slane %v1808, 5
        %v1815 = vsel %vm731, %v1813, %v1814
        %v1816 = vrot.slane %v1809, 5
        %v1817 = vsel %vm731, %v1814, %v1816
        %v1820 = vadd.f32 %v1802, %v1815
        %v1821 = vadd.f32 %v1803, %v1817
        %v1822 = vstv %s1805
        %v1823 = vmul.f32 %v1822, %v568
        %v1824 = vmul.f32 %v1822, %v569
        %v1825 = vmul.f32 %v1822, %v570
        %v1829 = vrot.slane %v1823, 5
        %v1830 = vrot.slane %v1824, 5
        %v1831 = vsel %vm731, %v1829, %v1830
        %v1832 = vrot.slane %v1825, 5
        %v1833 = vsel %vm731, %v1830, %v1832
        %v1836 = vadd.f32 %v1820, %v1831
        %v1837 = vadd.f32 %v1821, %v1833
        %s1838 = sld [smem:[#allocation4 + $0x2f]]
        %s1839 = sld [smem:[#allocation4 + $0x60]]
        %v1840 = vstv %s1838
        %v1841 = vmul.f32 %v1840, %v565
        %v1842 = vmul.f32 %v1840, %v566
        %v1843 = vmul.f32 %v1840, %v567
        %v1847 = vrot.slane %v1841, 6
        %v1848 = vrot.slane %v1842, 6
        %v1849 = vsel %vm766, %v1847, %v1848
        %v1850 = vrot.slane %v1843, 6
        %v1851 = vsel %vm766, %v1848, %v1850
        %v1854 = vadd.f32 %v1836, %v1849
        %v1855 = vadd.f32 %v1837, %v1851
        %v1856 = vstv %s1839
        %v1857 = vmul.f32 %v1856, %v568
        %v1858 = vmul.f32 %v1856, %v569
        %v1859 = vmul.f32 %v1856, %v570
        %v1863 = vrot.slane %v1857, 6
        %v1864 = vrot.slane %v1858, 6
        %v1865 = vsel %vm766, %v1863, %v1864
        %v1866 = vrot.slane %v1859, 6
        %v1867 = vsel %vm766, %v1864, %v1866
        %v1870 = vadd.f32 %v1854, %v1865
        %v1871 = vadd.f32 %v1855, %v1867
        %s1872 = sld [smem:[#allocation4 + $0x6]]
        %s1873 = sld [smem:[#allocation4 + $0x37]]
        %v1874 = vstv %s1872
        %v1875 = vmul.f32 %v1874, %v565
        %v1876 = vmul.f32 %v1874, %v566
        %v1877 = vadd.f32 %v1875, 0.0
        %v1878 = vadd.f32 %v1876, 0.0
        %v1879 = vstv %s1873
        %v1880 = vmul.f32 %v1879, %v568
        %v1881 = vmul.f32 %v1879, %v569
        %v1882 = vadd.f32 %v1877, %v1880
        %v1883 = vadd.f32 %v1878, %v1881
        %s1884 = sld [smem:[#allocation4 + $0xd]]
        %s1885 = sld [smem:[#allocation4 + $0x3e]]
        %v1886 = vstv %s1884
        %v1887 = vmul.f32 %v1886, %v565
        %v1888 = vmul.f32 %v1886, %v566
        %v1889 = vmul.f32 %v1886, %v567
        %v1893 = vrot.slane %v1887, 1
        %v1894 = vrot.slane %v1888, 1
        %v1895 = vsel %vm592, %v1893, %v1894
        %v1896 = vrot.slane %v1889, 1
        %v1897 = vsel %vm592, %v1894, %v1896
        %v1900 = vadd.f32 %v1882, %v1895
        %v1901 = vadd.f32 %v1883, %v1897
        %v1902 = vstv %s1885
        %v1903 = vmul.f32 %v1902, %v568
        %v1904 = vmul.f32 %v1902, %v569
        %v1905 = vmul.f32 %v1902, %v570
        %v1909 = vrot.slane %v1903, 1
        %v1910 = vrot.slane %v1904, 1
        %v1911 = vsel %vm592, %v1909, %v1910
        %v1912 = vrot.slane %v1905, 1
        %v1913 = vsel %vm592, %v1910, %v1912
        %v1916 = vadd.f32 %v1900, %v1911
        %v1917 = vadd.f32 %v1901, %v1913
        %s1918 = sld [smem:[#allocation4 + $0x14]]
        %s1919 = sld [smem:[#allocation4 + $0x45]]
        %v1920 = vstv %s1918
        %v1921 = vmul.f32 %v1920, %v565
        %v1922 = vmul.f32 %v1920, %v566
        %v1923 = vmul.f32 %v1920, %v567
        %v1927 = vrot.slane %v1921, 2
        %v1928 = vrot.slane %v1922, 2
        %v1929 = vsel %vm627, %v1927, %v1928
        %v1930 = vrot.slane %v1923, 2
        %v1931 = vsel %vm627, %v1928, %v1930
        %v1934 = vadd.f32 %v1916, %v1929
        %v1935 = vadd.f32 %v1917, %v1931
        %v1936 = vstv %s1919
        %v1937 = vmul.f32 %v1936, %v568
        %v1938 = vmul.f32 %v1936, %v569
        %v1939 = vmul.f32 %v1936, %v570
        %v1943 = vrot.slane %v1937, 2
        %v1944 = vrot.slane %v1938, 2
        %v1945 = vsel %vm627, %v1943, %v1944
        %v1946 = vrot.slane %v1939, 2
        %v1947 = vsel %vm627, %v1944, %v1946
        %v1950 = vadd.f32 %v1934, %v1945
        %v1951 = vadd.f32 %v1935, %v1947
        %s1952 = sld [smem:[#allocation4 + $0x1b]]
        %s1953 = sld [smem:[#allocation4 + $0x4c]]
        %v1954 = vstv %s1952
        %v1955 = vmul.f32 %v1954, %v565
        %v1956 = vmul.f32 %v1954, %v566
        %v1957 = vmul.f32 %v1954, %v567
        %v1961 = vrot.slane %v1955, 3
        %v1962 = vrot.slane %v1956, 3
        %v1963 = vsel %vm662, %v1961, %v1962
        %v1964 = vrot.slane %v1957, 3
        %v1965 = vsel %vm662, %v1962, %v1964
        %v1968 = vadd.f32 %v1950, %v1963
        %v1969 = vadd.f32 %v1951, %v1965
        %v1970 = vstv %s1953
        %v1971 = vmul.f32 %v1970, %v568
        %v1972 = vmul.f32 %v1970, %v569
        %v1973 = vmul.f32 %v1970, %v570
        %v1977 = vrot.slane %v1971, 3
        %v1978 = vrot.slane %v1972, 3
        %v1979 = vsel %vm662, %v1977, %v1978
        %v1980 = vrot.slane %v1973, 3
        %v1981 = vsel %vm662, %v1978, %v1980
        %v1984 = vadd.f32 %v1968, %v1979
        %v1985 = vadd.f32 %v1969, %v1981
        %s1986 = sld [smem:[#allocation4 + $0x22]]
        %s1987 = sld [smem:[#allocation4 + $0x53]]
        %v1988 = vstv %s1986
        %v1989 = vmul.f32 %v1988, %v565
        %v1990 = vmul.f32 %v1988, %v566
        %v1991 = vmul.f32 %v1988, %v567
        %v1995 = vrot.slane %v1989, 4
        %v1996 = vrot.slane %v1990, 4
        %v1997 = vsel %vm206, %v1995, %v1996
        %v1998 = vrot.slane %v1991, 4
        %v1999 = vsel %vm206, %v1996, %v1998
        %v2002 = vadd.f32 %v1984, %v1997
        %v2003 = vadd.f32 %v1985, %v1999
        %v2004 = vstv %s1987
        %v2005 = vmul.f32 %v2004, %v568
        %v2006 = vmul.f32 %v2004, %v569
        %v2007 = vmul.f32 %v2004, %v570
        %v2011 = vrot.slane %v2005, 4
        %v2012 = vrot.slane %v2006, 4
        %v2013 = vsel %vm206, %v2011, %v2012
        %v2014 = vrot.slane %v2007, 4
        %v2015 = vsel %vm206, %v2012, %v2014
        %v2018 = vadd.f32 %v2002, %v2013
        %v2019 = vadd.f32 %v2003, %v2015
        %s2020 = sld [smem:[#allocation4 + $0x29]]
        %s2021 = sld [smem:[#allocation4 + $0x5a]]
        %v2022 = vstv %s2020
        %v2023 = vmul.f32 %v2022, %v565
        %v2024 = vmul.f32 %v2022, %v566
        %v2025 = vmul.f32 %v2022, %v567
        %v2029 = vrot.slane %v2023, 5
        %v2030 = vrot.slane %v2024, 5
        %v2031 = vsel %vm731, %v2029, %v2030
        %v2032 = vrot.slane %v2025, 5
        %v2033 = vsel %vm731, %v2030, %v2032
        %v2036 = vadd.f32 %v2018, %v2031
        %v2037 = vadd.f32 %v2019, %v2033
        %v2038 = vstv %s2021
        %v2039 = vmul.f32 %v2038, %v568
        %v2040 = vmul.f32 %v2038, %v569
        %v2041 = vmul.f32 %v2038, %v570
        %v2045 = vrot.slane %v2039, 5
        %v2046 = vrot.slane %v2040, 5
        %v2047 = vsel %vm731, %v2045, %v2046
        %v2048 = vrot.slane %v2041, 5
        %v2049 = vsel %vm731, %v2046, %v2048
        %v2052 = vadd.f32 %v2036, %v2047
        %v2053 = vadd.f32 %v2037, %v2049
        %s2054 = sld [smem:[#allocation4 + $0x30]]
        %s2055 = sld [smem:[#allocation4 + $0x61]]
        %v2056 = vstv %s2054
        %v2057 = vmul.f32 %v2056, %v565
        %v2058 = vmul.f32 %v2056, %v566
        %v2059 = vmul.f32 %v2056, %v567
        %v2063 = vrot.slane %v2057, 6
        %v2064 = vrot.slane %v2058, 6
        %v2065 = vsel %vm766, %v2063, %v2064
        %v2066 = vrot.slane %v2059, 6
        %v2067 = vsel %vm766, %v2064, %v2066
        %v2070 = vadd.f32 %v2052, %v2065
        %v2071 = vadd.f32 %v2053, %v2067
        %v2072 = vstv %s2055
        %v2073 = vmul.f32 %v2072, %v568
        %v2074 = vmul.f32 %v2072, %v569
        %v2075 = vmul.f32 %v2072, %v570
        %v2079 = vrot.slane %v2073, 6
        %v2080 = vrot.slane %v2074, 6
        %v2081 = vsel %vm766, %v2079, %v2080
        %v2082 = vrot.slane %v2075, 6
        %v2083 = vsel %vm766, %v2080, %v2082
        %v2086 = vadd.f32 %v2070, %v2081
        %v2087 = vadd.f32 %v2071, %v2083
        %2090 = vrot.lane.b32.xlu0 %v1006, 127
        %v2091 = vpop.permute.xlu0 %2090
        %2092 = vrot.lane.b32.xlu0 %v1007, 127
        %v2093 = vpop.permute.xlu0 %2092
        %v2096 = vadd.f32 %v790, %v2091
        %v2097 = vadd.f32 %v791, %v2093
        %2100 = vrot.lane.b32.xlu0 %v1438, 127
        %v2101 = vpop.permute.xlu0 %2100
        %2102 = vrot.lane.b32.xlu0 %v1439, 127
        %v2103 = vpop.permute.xlu0 %2102
        %v2106 = vadd.f32 %v1222, %v2101
        %v2107 = vadd.f32 %v1223, %v2103
        %2110 = vrot.lane.b32.xlu0 %v2106, 126
        %v2111 = vpop.permute.xlu0 %2110
        %2112 = vrot.lane.b32.xlu0 %v2107, 126
        %v2113 = vpop.permute.xlu0 %2112
        %v2116 = vadd.f32 %v2096, %v2111
        %v2117 = vadd.f32 %v2097, %v2113
        %2120 = vrot.lane.b32.xlu0 %v1870, 127
        %v2121 = vpop.permute.xlu0 %2120
        %2122 = vrot.lane.b32.xlu0 %v1871, 127
        %v2123 = vpop.permute.xlu0 %2122
        %v2126 = vadd.f32 %v1654, %v2121
        %v2127 = vadd.f32 %v1655, %v2123
        %2130 = vrot.lane.b32.xlu0 %v2086, 126
        %v2131 = vpop.permute.xlu0 %2130
        %2132 = vrot.lane.b32.xlu0 %v2087, 126
        %v2133 = vpop.permute.xlu0 %2132
        %v2136 = vadd.f32 %v2126, %v2131
        %v2137 = vadd.f32 %v2127, %v2133
        %2140 = vrot.lane.b32.xlu0 %v2136, 124
        %v2141 = vpop.permute.xlu0 %2140
        %2142 = vrot.lane.b32.xlu0 %v2137, 124
        %v2143 = vpop.permute.xlu0 %2142
        %v2146 = vadd.f32 %v2116, %v2141
        %v2147 = vadd.f32 %v2117, %v2143
        %s2148 = sld [smem:[#allocation3]]
        %v2149 = vstv %s2148
        %v2150 = vadd.f32 %v2146, %v2149
        %v2151 = vadd.f32 %v2147, %v2149
        %v2152 = vxor.u32 %v2150, 2147483648
        %v2153 = vxor.u32 %v2151, 2147483648
        %v2154 = vmul.f32 %v2152, 1.442695
        %v2155 = vpow.pop %v2154
        %v2156 = vmul.f32 %v2153, 1.442695
        %v2157 = vpow.pop %v2156
        %v2158 = vadd.f32 %v2155, 1.0
        %v2159 = vadd.f32 %v2157, 1.0
        %v2160 = vrcp.pop %v2158
        %v2161 = vmul.f32 1.0, %v2160
        %v2162 = vrcp.pop %v2159
        %v2163 = vmul.f32 1.0, %v2162
        %v2164 = vcombine.high %v2161, 0.0
        %v2166 = vunpack.c.l.s4 1983009808
        %v2167 = vunpack.c.0.s8 %v2166
        %v2168 = vlaneseq
        %v2169 = vshrl.u32 %v2168, 7
        %v2170 = vsub.s32 %v2167, %v2169
        %v2171 = vrot.slane %v2161, %v2170
        %v2173 = vunpack.c.l.s4 1983009808
        %v2174 = vunpack.c.0.s8 %v2173
        %v2175 = vlaneseq
        %v2176 = vshrl.u32 %v2175, 7
        %v2177 = vsub.s32 %v2174, %v2176
        %v2178 = vrot.slane %v2164, %v2177
        %v2179 = vcombine.high %v2171, 0.0
        %v2181 = vunpack.c.l.s4 1934713408
        %v2182 = vunpack.c.0.s8 %v2181
        %v2183 = vlaneseq
        %v2184 = vshrl.u32 %v2183, 7
        %v2185 = vsub.s32 %v2182, %v2184
        %v2186 = vrot.slane %v2171, %v2185
        %v2188 = vunpack.c.l.s4 1934713408
        %v2189 = vunpack.c.0.s8 %v2188
        %v2190 = vlaneseq
        %v2191 = vshrl.u32 %v2190, 7
        %v2192 = vsub.s32 %v2189, %v2191
        %v2193 = vrot.slane %v2179, %v2192
        %v2194 = vcombine.high %v2178, 0.0
        %v2196 = vunpack.c.l.s4 1934713408
        %v2197 = vunpack.c.0.s8 %v2196
        %v2198 = vlaneseq
        %v2199 = vshrl.u32 %v2198, 7
        %v2200 = vsub.s32 %v2197, %v2199
        %v2201 = vrot.slane %v2178, %v2200
        %v2203 = vunpack.c.l.s4 1934713408
        %v2204 = vunpack.c.0.s8 %v2203
        %v2205 = vlaneseq
        %v2206 = vshrl.u32 %v2205, 7
        %v2207 = vsub.s32 %v2204, %v2206
        %v2208 = vrot.slane %v2194, %v2207
        %v2209 = vcombine.high %v2186, 0.0
        %v2210 = vcombine.high %v2193, 0.0
        %v2211 = vcombine.high %v2201, 0.0
        %v2212 = vcombine.high %v2208, 0.0
        %v2213 = vcombine.high %v2163, 0.0
        %v2215 = vunpack.c.l.s4 1983009808
        %v2216 = vunpack.c.0.s8 %v2215
        %v2217 = vlaneseq
        %v2218 = vshrl.u32 %v2217, 7
        %v2219 = vsub.s32 %v2216, %v2218
        %v2220 = vrot.slane %v2163, %v2219
        %v2222 = vunpack.c.l.s4 1983009808
        %v2223 = vunpack.c.0.s8 %v2222
        %v2224 = vlaneseq
        %v2225 = vshrl.u32 %v2224, 7
        %v2226 = vsub.s32 %v2223, %v2225
        %v2227 = vrot.slane %v2213, %v2226
        %v2228 = vcombine.high %v2220, 0.0
        %v2230 = vunpack.c.l.s4 1934713408
        %v2231 = vunpack.c.0.s8 %v2230
        %v2232 = vlaneseq
        %v2233 = vshrl.u32 %v2232, 7
        %v2234 = vsub.s32 %v2231, %v2233
        %v2235 = vrot.slane %v2220, %v2234
        %v2237 = vunpack.c.l.s4 1934713408
        %v2238 = vunpack.c.0.s8 %v2237
        %v2239 = vlaneseq
        %v2240 = vshrl.u32 %v2239, 7
        %v2241 = vsub.s32 %v2238, %v2240
        %v2242 = vrot.slane %v2228, %v2241
        %v2243 = vcombine.high %v2227, 0.0
        %v2245 = vunpack.c.l.s4 1934713408
        %v2246 = vunpack.c.0.s8 %v2245
        %v2247 = vlaneseq
        %v2248 = vshrl.u32 %v2247, 7
        %v2249 = vsub.s32 %v2246, %v2248
        %v2250 = vrot.slane %v2227, %v2249
        %v2252 = vunpack.c.l.s4 1934713408
        %v2253 = vunpack.c.0.s8 %v2252
        %v2254 = vlaneseq
        %v2255 = vshrl.u32 %v2254, 7
        %v2256 = vsub.s32 %v2253, %v2255
        %v2257 = vrot.slane %v2243, %v2256
        %v2258 = vcombine.high %v2235, 0.0
        %v2259 = vcombine.high %v2242, 0.0
        %v2260 = vcombine.high %v2250, 0.0
        %v2261 = vcombine.high %v2257, 0.0
        %2263 = vrot.lane.b32.xlu0 %v2209, 16
        %v2264 = vpop.permute.xlu0 %2263
        %2267 = vrot.lane.b32.xlu0 %v2193, 32
        %v2268 = vpop.permute.xlu0 %2267
        %2271 = vrot.lane.b32.xlu0 %v2210, 48
        %v2272 = vpop.permute.xlu0 %2271
        %2275 = vrot.lane.b32.xlu0 %v2201, 64
        %v2276 = vpop.permute.xlu0 %2275
        %2279 = vrot.lane.b32.xlu0 %v2211, 80
        %v2280 = vpop.permute.xlu0 %2279
        %2283 = vrot.lane.b32.xlu0 %v2208, 96
        %v2284 = vpop.permute.xlu0 %2283
        %2287 = vrot.lane.b32.xlu0 %v2212, 112
        %v2288 = vpop.permute.xlu0 %2287
        %2291 = vrot.lane.b32.xlu0 %v2258, 16
        %v2292 = vpop.permute.xlu0 %2291
        %2295 = vrot.lane.b32.xlu0 %v2242, 32
        %v2296 = vpop.permute.xlu0 %2295
        %2299 = vrot.lane.b32.xlu0 %v2259, 48
        %v2300 = vpop.permute.xlu0 %2299
        %2303 = vrot.lane.b32.xlu0 %v2250, 64
        %v2304 = vpop.permute.xlu0 %2303
        %2307 = vrot.lane.b32.xlu0 %v2260, 80
        %v2308 = vpop.permute.xlu0 %2307
        %2311 = vrot.lane.b32.xlu0 %v2257, 96
        %v2312 = vpop.permute.xlu0 %2311
        %2315 = vrot.lane.b32.xlu0 %v2261, 112
        %v2316 = vpop.permute.xlu0 %2315
        %vm2318 = vcmask 130048
        %v2319 = vsel %vm2318, %v2186, %v2264
        %vm2320 = vcmask 261120
        %v2321 = vsel %vm2320, %v2319, %v2268
        %vm2322 = vcmask 392192
        %v2323 = vsel %vm2322, %v2321, %v2272
        %vm2324 = vcmask 523264
        %v2325 = vsel %vm2324, %v2323, %v2276
        %vm2326 = vcmask 654336
        %v2327 = vsel %vm2326, %v2325, %v2280
        %vm2328 = vcmask 785408
        %v2329 = vsel %vm2328, %v2327, %v2284
        %vm2330 = vcmask 916480
        %v2331 = vsel %vm2330, %v2329, %v2288
        %v2332 = vsel %vm2318, %v2235, %v2292
        %v2333 = vsel %vm2320, %v2332, %v2296
        %v2334 = vsel %vm2322, %v2333, %v2300
        %v2335 = vsel %vm2324, %v2334, %v2304
        %v2336 = vsel %vm2326, %v2335, %v2308
        %v2337 = vsel %vm2328, %v2336, %v2312
        %v2338 = vsel %vm2330, %v2337, %v2316
        %v2339 = vld [vmem:[%s178] sm:$0xff]
        %v2340 = vlaneseq
        %v2341 = vshrl.u32 %v2340, 7
        %v2342 = vsub.s32 0, %v2341
        %v2343 = vrot.slane %v2331, %v2342
        %v2344 = vlaneseq
        %v2345 = vshrl.u32 %v2344, 7
        %v2346 = vsub.s32 0, %v2345
        %v2347 = vrot.slane %v2338, %v2346
        %v2350 = vcombine.low %v2343, %v2347
        %v2352 = vmul.f32 %v2339, %v2350
        %2353 = vst [vmem:[%s201] sm:$0xff] %v2352
        %s2354 = sand.u32 %s98, 1
        %s2355 = scalar_lea.sflag [#allocation6], %s2354
        %s2356 = sand.u32 %s98, 1
        %s2357 = smul.addr %s2356, 8
        %s2358 = scalar_lea.vmem [#allocation9], %s2357
        // Predicated region
        $region41: #{tpu_custom_call.1} parent=31 // pred_check
          %p2359 = pneg %p108
        $region42: #{tpu_custom_call.1} parent=31 // pred_check_branch
          %2361 = sbr.rel (%p2359) target = $region44
        $region43: #{tpu_custom_call.1} parent=31 // pred_region
          %s2363 = ssub.s32 128, 128
          %2364 = vsyncadd %s2355, %s2363
          %s2365 = smul.addr %s22, 2
          %s2366 = smul.addr %s2365, 64
          %s2367 = scalar_lea.hbm %s3, %s2366
          %s2369 = sshll.u32 %s2358, 4
          %s2370 = int_to_ptr.vmem [resolvable:$true] %s2369
          %2372 = dma.vmem_to_hbm [thread:$0]  %s2370, 128, %s2367, %s2355
        $region44: #{tpu_custom_call.1} parent=31 // pred_fallthru
          _
      $region32: #{tpu_custom_call.1} parent=5 // pred_fallthru
        _
      %p2373 = scmp.le.s32.totalorder 2, %s17
      // Predicated region
      $region45: #{tpu_custom_call.1} parent=5 // pred_check
        %p2374 = pneg %p2373
      $region46: #{tpu_custom_call.1} parent=5 // pred_check_branch
        %2376 = sbr.rel (%p2374) target = $region48
      $region47: #{tpu_custom_call.1} parent=5 // pred_region
        %s2377 = ssub.s32 %s17, 2
        // Predicated region
        $region49: #{tpu_custom_call.1} parent=47 // pred_check
          %p2378 = pneg %p114
        $region50: #{tpu_custom_call.1} parent=47 // pred_check_branch
          %2380 = sbr.rel (%p2378) target = $region52
        $region51: #{tpu_custom_call.1} parent=47 // pred_region
          %s2381 = sand.u32 %s99, 1
          %s2382 = scalar_lea.sflag [#allocation6], %s2381
          %s2383 = sand.u32 %s99, 1
          %s2384 = smul.addr %s2383, 8
          %s2385 = scalar_lea.vmem [#allocation9], %s2384
          %2386 = dma.done %s2382, 128
        $region52: #{tpu_custom_call.1} parent=47 // pred_fallthru
          _
      $region48: #{tpu_custom_call.1} parent=5 // pred_fallthru
        _
    $region6: #{tpu_custom_call.1} parent=1 // loop_footer
      %s21 = sadd.s32 1, %s17
    $region7: #{tpu_custom_call.1} parent=1 // loop_footer_branch
      %16 = sbr.rel target = $region3
    $region8: #{tpu_custom_call.1} parent=1 // loop_exit
      _
    %2387 = vsyncpa [#allocation5], 1
    %s2388 = scalar_lea.sflag [#allocation5], 1
    %2389 = vsyncpa %s2388, 1
    %2390 = vsyncpa [#allocation6], 1
    %s2391 = scalar_lea.sflag [#allocation6], 1
    %2392 = vsyncpa %s2391, 1
    %2393 = vsyncpa [#allocation7], 1
    %s2394 = scalar_lea.sflag [#allocation7], 1
    %2395 = vsyncpa %s2394, 1

</llo_original>
